<compile_context>
chip_gen: v6e
topology: v6e:2x2x1
jax: 0.10.0
libtpu: 0.0.40
codegen_flags: <defaults>
</compile_context>

<pallas_src>
import functools
import math

import jax
import jax.numpy as jnp
from jax.experimental import pallas as pl
from jax.experimental.pallas import tpu as pltpu


# ------------------------------ Pallas kernel --------------------------------

def _mutual_attention_kernel(x_ref, y_ref,
                             wq_ref, bq_ref, wk_ref, bk_ref,
                             wv_ref, bvr_ref, wo_ref, bo_ref,
                             temp_ref, mask_ref, eye_ref,
                             o_ref,
                             ssq_q, ssq_k, gram, m_eff, b_eff,
                             *, num_tiles):
    f32 = jnp.float32
    bf16 = jnp.bfloat16
    ph = pl.program_id(1)          # 0 = stats phase, 1 = apply phase
    t = pl.program_id(2)           # HW-tile index
    C = gram.shape[0]

    # -------------------- phase 0: accumulate norm / Gram stats ---------------
    @pl.when(ph == 0)
    def _stats_phase():
        @pl.when(t == 0)
        def _init():
            ssq_q[...] = jnp.zeros_like(ssq_q)
            ssq_k[...] = jnp.zeros_like(ssq_k)
            gram[...] = jnp.zeros_like(gram)

        x = x_ref[0].astype(f32)                                   # (C, HWT)
        y = y_ref[0].astype(f32)
        # 1x1 convs as left matmuls; bf16 operands, f32 MXU accumulation.
        q = jnp.dot(wq_ref[...].astype(bf16), (x * y).astype(bf16),
                    preferred_element_type=f32) + bq_ref[...].astype(f32)
        k = jnp.dot(wk_ref[...].astype(bf16), x.astype(bf16),
                    preferred_element_type=f32) + bk_ref[...].astype(f32)

        ssq_q[...] += jnp.sum(q * q, axis=-1, keepdims=True)        # (C, 1)
        ssq_k[...] += jnp.sum(k * k, axis=-1, keepdims=True)        # (C, 1)
        gram[...] += jax.lax.dot_general(                            # q @ k^T
            q.astype(bf16), k.astype(bf16),
            (((1,), (1,)), ((), ())), preferred_element_type=f32)

        # ----- last HW tile: softmax + fold Wv / project_out into one matrix --
        @pl.when(t == num_tiles - 1)
        def _finalize():
            # F.normalize(dim=-1): 1 / max(||.||, 1e-12), via EUP rsqrt.
            inv_q = jax.lax.rsqrt(jnp.maximum(ssq_q[...], 1e-24))    # (C, 1)
            inv_k = jax.lax.rsqrt(jnp.maximum(ssq_k[...], 1e-24))    # (C, 1)
            # Row-scale by inv_q and the per-head temperature; column-scale by
            # inv_k via a tiny matmul with diag(inv_k) (avoids a sublane->lane
            # relayout of inv_k).
            s = jnp.dot(gram[...] * inv_q * temp_ref[...].astype(f32),
                        eye_ref[...].astype(f32) * inv_k,
                        preferred_element_type=f32)                  # (C, C)
            # Block-diagonal head mask.  |s| <= |temperature| (q, k unit-norm),
            # so exp is overflow-safe without the usual max-subtraction.
            p = jnp.exp(s) * mask_ref[...].astype(f32)
            p = p * pl.reciprocal(jnp.sum(p, axis=-1, keepdims=True),
                                  approx=True)
            # Fold V conv and project_out:
            #   out = Wo @ (P @ (Wv @ x + bv)) + bo = M @ x + b_eff
            wop = jnp.dot(wo_ref[...].astype(f32), p,
                          preferred_element_type=f32)                # (C, C)
            m_eff[...] = jnp.dot(wop, wv_ref[...].astype(f32),
                                 preferred_element_type=f32)         # (C, C)
            b_eff[...] = (jnp.sum(wop * bvr_ref[...].astype(f32),
                                  axis=-1, keepdims=True)
                          + bo_ref[...].astype(f32))                 # (C, 1)

    # -------------------- phase 1: apply  out = M @ x + b_eff -----------------
    @pl.when(ph == 1)
    def _apply_phase():
        x = x_ref[0]
        out = jnp.dot(m_eff[...].astype(bf16), x.astype(bf16),
                      preferred_element_type=f32) + b_eff[...]
        o_ref[0] = out.astype(o_ref.dtype)


# --------------------------------- wrapper ------------------------------------

def _vmem_capacity_bytes():
    try:
        info = pltpu.get_tpu_info()
        cap = getattr(info, "vmem_capacity_bytes", None)
        if cap:
            return int(cap)
    except Exception:
        pass
    return 64 * 1024 * 1024        # conservative default (v7x physical VMEM)


def _pick_hw_tile(hw, c, itemsize, budget_bytes):
    """Largest multiple-of-128 divisor of hw whose working set fits the budget."""
    # Per HW lane: double-buffered x/y/out pipeline blocks + ~6 f32 (C, HWT)
    # kernel intermediates (x, y, x*y, q, k, casts).
    per_lane = c * (3 * 2 * itemsize + 6 * 4)
    cap = max(budget_bytes // per_lane, 128)
    if hw <= cap or hw % 128 != 0:
        return hw                   # whole image fits (or ragged HW: full block)
    best = 128
    tile = 128
    while tile <= min(cap, hw):
        if hw % tile == 0:
            best = tile
        tile += 128
    return best


def mutual_attention(x, y, params, num_heads, hw_tile=None):
    B, C, H, W = x.shape
    assert C % num_heads == 0
    ch = C // num_heads
    HW = H * W
    xr = x.reshape(B, C, HW)        # NCHW flattened; HW on the lane axis
    yr = y.reshape(B, C, HW)

    vmem_cap = _vmem_capacity_bytes()
    budget = min(int(vmem_cap * 0.6), 80 * 1024 * 1024)
    if hw_tile is None:
        hw_tile = _pick_hw_tile(HW, C, x.dtype.itemsize, budget)
    assert HW % hw_tile == 0, (HW, hw_tile)
    num_tiles = HW // hw_tile

    # Tiny constant side inputs (built once in the wrapper, not in the kernel).
    temp_row = jnp.repeat(params['temperature'].reshape(num_heads, 1),
                          ch, axis=0).astype(jnp.float32)            # (C, 1)
    head_ids = jnp.arange(C, dtype=jnp.int32) // ch
    head_mask = (head_ids[:, None] == head_ids[None, :]).astype(jnp.float32)
    eye_c = jnp.eye(C, dtype=jnp.float32)
    bv_row = params['bv'].reshape(1, C)

    x_spec = pl.BlockSpec((1, C, hw_tile), lambda b, ph, t: (b, 0, t))
    # y is only read in phase 0; pin its block during phase 1 so it is never
    # re-fetched (zero extra HBM traffic for y).
    y_spec = pl.BlockSpec(
        (1, C, hw_tile),
        lambda b, ph, t: (b, 0, ph * (num_tiles - 1) + (1 - ph) * t))
    # Output is only written in phase 1; keep it pinned on tile 0 during phase 0
    # so no block is written back before the kernel has filled it.
    out_spec = pl.BlockSpec((1, C, hw_tile), lambda b, ph, t: (b, 0, ph * t))
    w_spec = pl.BlockSpec((C, C), lambda b, ph, t: (0, 0))   # resident weights
    col_spec = pl.BlockSpec((C, 1), lambda b, ph, t: (0, 0))
    row_spec = pl.BlockSpec((1, C), lambda b, ph, t: (0, 0))

    kern = functools.partial(_mutual_attention_kernel, num_tiles=num_tiles)
    out = pl.pallas_call(
        kern,
        out_shape=jax.ShapeDtypeStruct((B, C, HW), x.dtype),
        grid=(B, 2, num_tiles),
        in_specs=[x_spec, y_spec,
                  w_spec, col_spec,          # wq, bq
                  w_spec, col_spec,          # wk, bk
                  w_spec, row_spec,          # wv, bv (row layout)
                  w_spec, col_spec,          # wo, bo
                  col_spec, w_spec, w_spec],  # temperature, head mask, identity
        out_specs=out_spec,
        scratch_shapes=[
            pltpu.VMEM((C, 1), jnp.float32),   # sum(q^2) over HW
            pltpu.VMEM((C, 1), jnp.float32),   # sum(k^2) over HW
            pltpu.VMEM((C, C), jnp.float32),   # Gram  q @ k^T
            pltpu.VMEM((C, C), jnp.float32),   # M = Wo @ P @ Wv
            pltpu.VMEM((C, 1), jnp.float32),   # b_eff = Wo @ P @ bv + bo
        ],
        # TODO(synk): when B == 1 on v7x (2 TensorCores) the batch axis leaves
        # the second core idle; splitting the HW reduction across cores would
        # need a cross-core combine of the Gram/norm stats.
        compiler_params=pltpu.CompilerParams(
            dimension_semantics=("parallel", "arbitrary", "arbitrary"),
            vmem_limit_bytes=int(budget)),
    )(xr, yr,
      params['wq'], params['bq'], params['wk'], params['bk'],
      params['wv'], bv_row, params['wo'], params['bo'],
      temp_row, head_mask, eye_c)
    return out.reshape(B, C, H, W)


# ------------------------------ params / reference ----------------------------

def init_params(key, dim, num_heads):
    ks = jax.random.split(key, 9)

    def w(k):
        return jax.random.normal(k, (dim, dim), jnp.float32) / math.sqrt(dim)

    def b(k):
        return 0.1 * jax.random.normal(k, (dim, 1), jnp.float32)

    return dict(
        wq=w(ks[0]), bq=b(ks[1]),
        wk=w(ks[2]), bk=b(ks[3]),
        wv=w(ks[4]), bv=b(ks[5]),
        wo=w(ks[6]), bo=b(ks[7]),
        temperature=1.0 + 0.1 * jax.random.normal(
            ks[8], (num_heads, 1, 1), jnp.float32),
    )


def mutual_attention_ref(x, y, p, num_heads):
    """Pure-JAX reference mirroring the PyTorch forward."""
    B, C, H, W = x.shape
    HW = H * W
    ch = C // num_heads

    def conv1x1(t, w, b):
        return jnp.einsum('oc,bcn->bon', w, t) + b[None, :, :]

    xr = x.reshape(B, C, HW)
    yr = y.reshape(B, C, HW)
    q = conv1x1(xr * yr, p['wq'], p['bq'])
    k = conv1x1(xr, p['wk'], p['bk'])
    v = conv1x1(xr, p['wv'], p['bv'])

    def heads(t):
        return t.reshape(B, num_heads, ch, HW)

    q, k, v = heads(q), heads(k), heads(v)
    q = q / jnp.maximum(jnp.linalg.norm(q, axis=-1, keepdims=True), 1e-12)
    k = k / jnp.maximum(jnp.linalg.norm(k, axis=-1, keepdims=True), 1e-12)
    temp = p['temperature'].reshape(1, num_heads, 1, 1)
    attn = jnp.einsum('bhcn,bhdn->bhcd', q, k) * temp
    attn = jax.nn.softmax(attn, axis=-1)
    out = jnp.einsum('bhcd,bhdn->bhcn', attn, v).reshape(B, C, HW)
    out = conv1x1(out, p['wo'], p['bo'])
    return out.reshape(B, C, H, W)


# ----------------------------------- main --------------------------------------

if __name__ == "__main__":
    B, C, H, W = 2, 16, 16, 16        # HW = 256, head_dim = 8
    num_heads = 2

    key = jax.random.PRNGKey(0)
    kx, ky, kp = jax.random.split(key, 3)
    x = jax.random.normal(kx, (B, C, H, W), jnp.float32)
    y = jax.random.normal(ky, (B, C, H, W), jnp.float32)
    params = init_params(kp, C, num_heads)

    # hw_tile=128 -> two HW tiles per image: exercises the tiled two-phase path
    # (stats accumulation over tiles + per-tile apply).
    fwd = jax.jit(functools.partial(mutual_attention, num_heads=num_heads,
                                    hw_tile=128))
    out = jax.block_until_ready(fwd(x, y, params))

    ref = mutual_attention_ref(x, y, params, num_heads)
    assert out.shape == (B, C, H, W)
    assert bool(jnp.all(jnp.isfinite(out)))
    max_err = float(jnp.max(jnp.abs(out - ref)))
    assert max_err < 5e-2, f"max abs error vs reference: {max_err}"
    print("KERNEL_OK")
</pallas_src>

<mosaic_0001>
module attributes {stable_mosaic.version = 11 : i64} {
  func.func @_mutual_attention_kernel(%arg0: i32, %arg1: i32, %arg2: i32, %arg3: memref<1x16x128xf32, #tpu.memory_space<vmem>>, %arg4: memref<1x16x128xf32, #tpu.memory_space<vmem>>, %arg5: memref<16x16xf32, #tpu.memory_space<vmem>>, %arg6: memref<16x1xf32, #tpu.memory_space<vmem>>, %arg7: memref<16x16xf32, #tpu.memory_space<vmem>>, %arg8: memref<16x1xf32, #tpu.memory_space<vmem>>, %arg9: memref<16x16xf32, #tpu.memory_space<vmem>>, %arg10: memref<1x16xf32, #tpu.memory_space<vmem>>, %arg11: memref<16x16xf32, #tpu.memory_space<vmem>>, %arg12: memref<16x1xf32, #tpu.memory_space<vmem>>, %arg13: memref<16x1xf32, #tpu.memory_space<vmem>>, %arg14: memref<16x16xf32, #tpu.memory_space<vmem>>, %arg15: memref<16x16xf32, #tpu.memory_space<vmem>>, %arg16: memref<1x16x128xf32, #tpu.memory_space<vmem>>, %arg17: memref<16x1xf32, #tpu.memory_space<vmem>>, %arg18: memref<16x1xf32, #tpu.memory_space<vmem>>, %arg19: memref<16x16xf32, #tpu.memory_space<vmem>>, %arg20: memref<16x16xf32, #tpu.memory_space<vmem>>, %arg21: memref<16x1xf32, #tpu.memory_space<vmem>>) attributes {dimension_semantics = [#tpu.dimension_semantics<parallel>, #tpu.dimension_semantics<arbitrary>, #tpu.dimension_semantics<arbitrary>], iteration_bounds = array<i64: 2, 2, 2>, scalar_prefetch = 0 : i64, scratch_operands = 5 : i64, tpu.core_type = #tpu.core_type<tc>, window_params = [{transform_indices = @transform_0, window_bounds = array<i64: 1, 16, 128>}, {transform_indices = @transform_1, window_bounds = array<i64: 1, 16, 128>}, {pipeline_mode = #tpu.pipeline_mode<synchronous>, transform_indices = @transform_2, window_bounds = array<i64: 16, 16>}, {pipeline_mode = #tpu.pipeline_mode<synchronous>, transform_indices = @transform_3, window_bounds = array<i64: 16, 1>}, {pipeline_mode = #tpu.pipeline_mode<synchronous>, transform_indices = @transform_4, window_bounds = array<i64: 16, 16>}, {pipeline_mode = #tpu.pipeline_mode<synchronous>, transform_indices = @transform_5, window_bounds = array<i64: 16, 1>}, {pipeline_mode = #tpu.pipeline_mode<synchronous>, transform_indices = @transform_6, window_bounds = array<i64: 16, 16>}, {pipeline_mode = #tpu.pipeline_mode<synchronous>, transform_indices = @transform_7, window_bounds = array<i64: 1, 16>}, {pipeline_mode = #tpu.pipeline_mode<synchronous>, transform_indices = @transform_8, window_bounds = array<i64: 16, 16>}, {pipeline_mode = #tpu.pipeline_mode<synchronous>, transform_indices = @transform_9, window_bounds = array<i64: 16, 1>}, {pipeline_mode = #tpu.pipeline_mode<synchronous>, transform_indices = @transform_10, window_bounds = array<i64: 16, 1>}, {pipeline_mode = #tpu.pipeline_mode<synchronous>, transform_indices = @transform_11, window_bounds = array<i64: 16, 16>}, {pipeline_mode = #tpu.pipeline_mode<synchronous>, transform_indices = @transform_12, window_bounds = array<i64: 16, 16>}, {transform_indices = @transform_13, window_bounds = array<i64: 1, 16, 128>}]} {
    %c0_i32 = arith.constant 0 : i32
    %0 = arith.cmpi eq, %arg1, %c0_i32 : i32
    %1 = arith.extui %0 : i1 to i32
    %c0_i32_0 = arith.constant 0 : i32
    %2 = arith.cmpi ne, %1, %c0_i32_0 : i32
    scf.if %2 {
      %c0_i32_2 = arith.constant 0 : i32
      %6 = arith.cmpi eq, %arg2, %c0_i32_2 : i32
      %7 = arith.extui %6 : i1 to i32
      %c0_i32_3 = arith.constant 0 : i32
      %8 = arith.cmpi ne, %7, %c0_i32_3 : i32
      scf.if %8 {
        %cst_35 = arith.constant 0.000000e+00 : f32
        %49 = vector.broadcast %cst_35 : f32 to vector<16x1xf32>
        %c0_36 = arith.constant 0 : index
        %c0_37 = arith.constant 0 : index
        %50 = vector.load %arg17[%c0_36, %c0_37] : memref<16x1xf32, #tpu.memory_space<vmem>>, vector<16x1xf32>
        tpu.vector_store %arg17[%c0_36, %c0_37], %49 {strides = array<i32>} : memref<16x1xf32, #tpu.memory_space<vmem>>, vector<16x1xf32>,
        %cst_38 = arith.constant 0.000000e+00 : f32
        %51 = vector.broadcast %cst_38 : f32 to vector<16x1xf32>
        %c0_39 = arith.constant 0 : index
        %c0_40 = arith.constant 0 : index
        %52 = vector.load %arg18[%c0_39, %c0_40] : memref<16x1xf32, #tpu.memory_space<vmem>>, vector<16x1xf32>
        tpu.vector_store %arg18[%c0_39, %c0_40], %51 {strides = array<i32>} : memref<16x1xf32, #tpu.memory_space<vmem>>, vector<16x1xf32>,
        %cst_41 = arith.constant 0.000000e+00 : f32
        %53 = vector.broadcast %cst_41 : f32 to vector<16x16xf32>
        %c0_42 = arith.constant 0 : index
        %c0_43 = arith.constant 0 : index
        %54 = vector.load %arg19[%c0_42, %c0_43] : memref<16x16xf32, #tpu.memory_space<vmem>>, vector<16x16xf32>
        tpu.vector_store %arg19[%c0_42, %c0_43], %53 {strides = array<i32>} : memref<16x16xf32, #tpu.memory_space<vmem>>, vector<16x16xf32>,
      } else {
      }
      %c0 = arith.constant 0 : index
      %c0_4 = arith.constant 0 : index
      %c0_5 = arith.constant 0 : index
      %9 = vector.load %arg3[%c0, %c0_4, %c0_5] : memref<1x16x128xf32, #tpu.memory_space<vmem>>, vector<1x16x128xf32>
      %10 = vector.shape_cast %9 : vector<1x16x128xf32> to vector<16x128xf32>
      %c0_6 = arith.constant 0 : index
      %c0_7 = arith.constant 0 : index
      %c0_8 = arith.constant 0 : index
      %11 = vector.load %arg4[%c0_6, %c0_7, %c0_8] : memref<1x16x128xf32, #tpu.memory_space<vmem>>, vector<1x16x128xf32>
      %12 = vector.shape_cast %11 : vector<1x16x128xf32> to vector<16x128xf32>
      %c0_9 = arith.constant 0 : index
      %c0_10 = arith.constant 0 : index
      %13 = vector.load %arg5[%c0_9, %c0_10] : memref<16x16xf32, #tpu.memory_space<vmem>>, vector<16x16xf32>
      %14 = arith.truncf %13 : vector<16x16xf32> to vector<16x16xbf16>
      %15 = arith.mulf %10, %12 : vector<16x128xf32>
      %16 = arith.truncf %15 : vector<16x128xf32> to vector<16x128xbf16>
      %cst = arith.constant dense<0.000000e+00> : vector<16x128xf32>
      %17 = tpu.matmul %14, %16, %cst {dimension_numbers = #tpu.dot_dimension_numbers<[1], [0], [0], [1], [0, 0, 1, 1], [], []>} : vector<16x16xbf16>, vector<16x128xbf16>, vector<16x128xf32> -> vector<16x128xf32>
      %c0_11 = arith.constant 0 : index
      %c0_12 = arith.constant 0 : index
      %18 = vector.load %arg6[%c0_11, %c0_12] : memref<16x1xf32, #tpu.memory_space<vmem>>, vector<16x1xf32>
      %19 = vector.broadcast %18 : vector<16x1xf32> to vector<16x128xf32>
      %20 = arith.addf %17, %19 : vector<16x128xf32>
      %c0_13 = arith.constant 0 : index
      %c0_14 = arith.constant 0 : index
      %21 = vector.load %arg7[%c0_13, %c0_14] : memref<16x16xf32, #tpu.memory_space<vmem>>, vector<16x16xf32>
      %22 = arith.truncf %21 : vector<16x16xf32> to vector<16x16xbf16>
      %23 = arith.truncf %10 : vector<16x128xf32> to vector<16x128xbf16>
      %cst_15 = arith.constant dense<0.000000e+00> : vector<16x128xf32>
      %24 = tpu.matmul %22, %23, %cst_15 {dimension_numbers = #tpu.dot_dimension_numbers<[1], [0], [0], [1], [0, 0, 1, 1], [], []>} : vector<16x16xbf16>, vector<16x128xbf16>, vector<16x128xf32> -> vector<16x128xf32>
      %c0_16 = arith.constant 0 : index
      %c0_17 = arith.constant 0 : index
      %25 = vector.load %arg8[%c0_16, %c0_17] : memref<16x1xf32, #tpu.memory_space<vmem>>, vector<16x1xf32>
      %26 = vector.broadcast %25 : vector<16x1xf32> to vector<16x128xf32>
      %27 = arith.addf %24, %26 : vector<16x128xf32>
      %c0_18 = arith.constant 0 : index
      %c0_19 = arith.constant 0 : index
      %28 = vector.load %arg17[%c0_18, %c0_19] : memref<16x1xf32, #tpu.memory_space<vmem>>, vector<16x1xf32>
      %29 = arith.mulf %20, %20 : vector<16x128xf32>
      %cst_20 = arith.constant dense<0.000000e+00> : vector<16xf32>
      %30 = vector.multi_reduction <add>, %29, %cst_20 [1] : vector<16x128xf32> to vector<16xf32>
      %31 = vector.shape_cast %30 : vector<16xf32> to vector<16x1xf32>
      %32 = arith.addf %28, %31 : vector<16x1xf32>
      %c0_21 = arith.constant 0 : index
      %c0_22 = arith.constant 0 : index
      %33 = vector.load %arg17[%c0_21, %c0_22] : memref<16x1xf32, #tpu.memory_space<vmem>>, vector<16x1xf32>
      tpu.vector_store %arg17[%c0_21, %c0_22], %32 {strides = array<i32>} : memref<16x1xf32, #tpu.memory_space<vmem>>, vector<16x1xf32>,
      %c0_23 = arith.constant 0 : index
      %c0_24 = arith.constant 0 : index
      %34 = vector.load %arg18[%c0_23, %c0_24] : memref<16x1xf32, #tpu.memory_space<vmem>>, vector<16x1xf32>
      %35 = arith.mulf %27, %27 : vector<16x128xf32>
      %cst_25 = arith.constant dense<0.000000e+00> : vector<16xf32>
      %36 = vector.multi_reduction <add>, %35, %cst_25 [1] : vector<16x128xf32> to vector<16xf32>
      %37 = vector.shape_cast %36 : vector<16xf32> to vector<16x1xf32>
      %38 = arith.addf %34, %37 : vector<16x1xf32>
      %c0_26 = arith.constant 0 : index
      %c0_27 = arith.constant 0 : index
      %39 = vector.load %arg18[%c0_26, %c0_27] : memref<16x1xf32, #tpu.memory_space<vmem>>, vector<16x1xf32>
      tpu.vector_store %arg18[%c0_26, %c0_27], %38 {strides = array<i32>} : memref<16x1xf32, #tpu.memory_space<vmem>>, vector<16x1xf32>,
      %c0_28 = arith.constant 0 : index
      %c0_29 = arith.constant 0 : index
      %40 = vector.load %arg19[%c0_28, %c0_29] : memref<16x16xf32, #tpu.memory_space<vmem>>, vector<16x16xf32>
      %41 = arith.truncf %20 : vector<16x128xf32> to vector<16x128xbf16>
      %42 = arith.truncf %27 : vector<16x128xf32> to vector<16x128xbf16>
      %cst_30 = arith.constant dense<0.000000e+00> : vector<16x16xf32>
      %43 = tpu.matmul %41, %42, %cst_30 {dimension_numbers = #tpu.dot_dimension_numbers<[1], [1], [0], [0], [0, 0, 1, 0], [], []>} : vector<16x128xbf16>, vector<16x128xbf16>, vector<16x16xf32> -> vector<16x16xf32>
      %44 = arith.addf %40, %43 : vector<16x16xf32>
      %c0_31 = arith.constant 0 : index
      %c0_32 = arith.constant 0 : index
      %45 = vector.load %arg19[%c0_31, %c0_32] : memref<16x16xf32, #tpu.memory_space<vmem>>, vector<16x16xf32>
      tpu.vector_store %arg19[%c0_31, %c0_32], %44 {strides = array<i32>} : memref<16x16xf32, #tpu.memory_space<vmem>>, vector<16x16xf32>,
      %c1_i32_33 = arith.constant 1 : i32
      %46 = arith.cmpi eq, %arg2, %c1_i32_33 : i32
      %47 = arith.extui %46 : i1 to i32
      %c0_i32_34 = arith.constant 0 : i32
      %48 = arith.cmpi ne, %47, %c0_i32_34 : i32
      scf.if %48 {
        %c0_35 = arith.constant 0 : index
        %c0_36 = arith.constant 0 : index
        %49 = vector.load %arg17[%c0_35, %c0_36] : memref<16x1xf32, #tpu.memory_space<vmem>>, vector<16x1xf32>
        %cst_37 = arith.constant 1.000000e-24 : f32
        %50 = vector.broadcast %cst_37 : f32 to vector<16x1xf32>
        %51 = arith.maximumf %49, %50 : vector<16x1xf32>
        %52 = math.rsqrt %51 : vector<16x1xf32>
        %c0_38 = arith.constant 0 : index
        %c0_39 = arith.constant 0 : index
        %53 = vector.load %arg18[%c0_38, %c0_39] : memref<16x1xf32, #tpu.memory_space<vmem>>, vector<16x1xf32>
        %cst_40 = arith.constant 1.000000e-24 : f32
        %54 = vector.broadcast %cst_40 : f32 to vector<16x1xf32>
        %55 = arith.maximumf %53, %54 : vector<16x1xf32>
        %56 = math.rsqrt %55 : vector<16x1xf32>
        %c0_41 = arith.constant 0 : index
        %c0_42 = arith.constant 0 : index
        %57 = vector.load %arg19[%c0_41, %c0_42] : memref<16x16xf32, #tpu.memory_space<vmem>>, vector<16x16xf32>
        %58 = vector.broadcast %52 : vector<16x1xf32> to vector<16x16xf32>
        %59 = arith.mulf %57, %58 : vector<16x16xf32>
        %c0_43 = arith.constant 0 : index
        %c0_44 = arith.constant 0 : index
        %60 = vector.load %arg13[%c0_43, %c0_44] : memref<16x1xf32, #tpu.memory_space<vmem>>, vector<16x1xf32>
        %61 = vector.broadcast %60 : vector<16x1xf32> to vector<16x16xf32>
        %62 = arith.mulf %59, %61 : vector<16x16xf32>
        %c0_45 = arith.constant 0 : index
        %c0_46 = arith.constant 0 : index
        %63 = vector.load %arg15[%c0_45, %c0_46] : memref<16x16xf32, #tpu.memory_space<vmem>>, vector<16x16xf32>
        %64 = vector.broadcast %56 : vector<16x1xf32> to vector<16x16xf32>
        %65 = arith.mulf %63, %64 : vector<16x16xf32>
        %cst_47 = arith.constant dense<0.000000e+00> : vector<16x16xf32>
        %66 = tpu.matmul %62, %65, %cst_47 {dimension_numbers = #tpu.dot_dimension_numbers<[1], [0], [0], [1], [0, 0, 1, 1], [], []>} : vector<16x16xf32>, vector<16x16xf32>, vector<16x16xf32> -> vector<16x16xf32>
        %67 = math.exp %66 : vector<16x16xf32>
        %c0_48 = arith.constant 0 : index
        %c0_49 = arith.constant 0 : index
        %68 = vector.load %arg14[%c0_48, %c0_49] : memref<16x16xf32, #tpu.memory_space<vmem>>, vector<16x16xf32>
        %69 = arith.mulf %67, %68 : vector<16x16xf32>
        %cst_50 = arith.constant dense<0.000000e+00> : vector<16xf32>
        %70 = vector.multi_reduction <add>, %69, %cst_50 [1] : vector<16x16xf32> to vector<16xf32>
        %71 = vector.shape_cast %70 : vector<16xf32> to vector<16x1xf32>
        %72 = tpu.reciprocal %71 {approx = true} : vector<16x1xf32> -> vector<16x1xf32>
        %73 = vector.broadcast %72 : vector<16x1xf32> to vector<16x16xf32>
        %74 = arith.mulf %69, %73 : vector<16x16xf32>
        %c0_51 = arith.constant 0 : index
        %c0_52 = arith.constant 0 : index
        %75 = vector.load %arg11[%c0_51, %c0_52] : memref<16x16xf32, #tpu.memory_space<vmem>>, vector<16x16xf32>
        %cst_53 = arith.constant dense<0.000000e+00> : vector<16x16xf32>
        %76 = tpu.matmul %75, %74, %cst_53 {dimension_numbers = #tpu.dot_dimension_numbers<[1], [0], [0], [1], [0, 0, 1, 1], [], []>} : vector<16x16xf32>, vector<16x16xf32>, vector<16x16xf32> -> vector<16x16xf32>
        %c0_54 = arith.constant 0 : index
        %c0_55 = arith.constant 0 : index
        %77 = vector.load %arg9[%c0_54, %c0_55] : memref<16x16xf32, #tpu.memory_space<vmem>>, vector<16x16xf32>
        %cst_56 = arith.constant dense<0.000000e+00> : vector<16x16xf32>
        %78 = tpu.matmul %76, %77, %cst_56 {dimension_numbers = #tpu.dot_dimension_numbers<[1], [0], [0], [1], [0, 0, 1, 1], [], []>} : vector<16x16xf32>, vector<16x16xf32>, vector<16x16xf32> -> vector<16x16xf32>
        %c0_57 = arith.constant 0 : index
        %c0_58 = arith.constant 0 : index
        %79 = vector.load %arg20[%c0_57, %c0_58] : memref<16x16xf32, #tpu.memory_space<vmem>>, vector<16x16xf32>
        tpu.vector_store %arg20[%c0_57, %c0_58], %78 {strides = array<i32>} : memref<16x16xf32, #tpu.memory_space<vmem>>, vector<16x16xf32>,
        %c0_59 = arith.constant 0 : index
        %c0_60 = arith.constant 0 : index
        %80 = vector.load %arg10[%c0_59, %c0_60] : memref<1x16xf32, #tpu.memory_space<vmem>>, vector<1x16xf32>
        %81 = vector.broadcast %80 : vector<1x16xf32> to vector<16x16xf32>
        %82 = arith.mulf %76, %81 : vector<16x16xf32>
        %cst_61 = arith.constant dense<0.000000e+00> : vector<16xf32>
        %83 = vector.multi_reduction <add>, %82, %cst_61 [1] : vector<16x16xf32> to vector<16xf32>
        %84 = vector.shape_cast %83 : vector<16xf32> to vector<16x1xf32>
        %c0_62 = arith.constant 0 : index
        %c0_63 = arith.constant 0 : index
        %85 = vector.load %arg12[%c0_62, %c0_63] : memref<16x1xf32, #tpu.memory_space<vmem>>, vector<16x1xf32>
        %86 = arith.addf %84, %85 : vector<16x1xf32>
        %c0_64 = arith.constant 0 : index
        %c0_65 = arith.constant 0 : index
        %87 = vector.load %arg21[%c0_64, %c0_65] : memref<16x1xf32, #tpu.memory_space<vmem>>, vector<16x1xf32>
        tpu.vector_store %arg21[%c0_64, %c0_65], %86 {strides = array<i32>} : memref<16x1xf32, #tpu.memory_space<vmem>>, vector<16x1xf32>,
      } else {
      }
    } else {
    }
    %c1_i32 = arith.constant 1 : i32
    %3 = arith.cmpi eq, %arg1, %c1_i32 : i32
    %4 = arith.extui %3 : i1 to i32
    %c0_i32_1 = arith.constant 0 : i32
    %5 = arith.cmpi ne, %4, %c0_i32_1 : i32
    scf.if %5 {
      %c0 = arith.constant 0 : index
      %c0_2 = arith.constant 0 : index
      %c0_3 = arith.constant 0 : index
      %6 = vector.load %arg3[%c0, %c0_2, %c0_3] : memref<1x16x128xf32, #tpu.memory_space<vmem>>, vector<1x16x128xf32>
      %7 = vector.shape_cast %6 : vector<1x16x128xf32> to vector<16x128xf32>
      %c0_4 = arith.constant 0 : index
      %c0_5 = arith.constant 0 : index
      %8 = vector.load %arg20[%c0_4, %c0_5] : memref<16x16xf32, #tpu.memory_space<vmem>>, vector<16x16xf32>
      %9 = arith.truncf %8 : vector<16x16xf32> to vector<16x16xbf16>
      %10 = arith.truncf %7 : vector<16x128xf32> to vector<16x128xbf16>
      %cst = arith.constant dense<0.000000e+00> : vector<16x128xf32>
      %11 = tpu.matmul %9, %10, %cst {dimension_numbers = #tpu.dot_dimension_numbers<[1], [0], [0], [1], [0, 0, 1, 1], [], []>} : vector<16x16xbf16>, vector<16x128xbf16>, vector<16x128xf32> -> vector<16x128xf32>
      %c0_6 = arith.constant 0 : index
      %c0_7 = arith.constant 0 : index
      %12 = vector.load %arg21[%c0_6, %c0_7] : memref<16x1xf32, #tpu.memory_space<vmem>>, vector<16x1xf32>
      %13 = vector.broadcast %12 : vector<16x1xf32> to vector<16x128xf32>
      %14 = arith.addf %11, %13 : vector<16x128xf32>
      %c0_8 = arith.constant 0 : index
      %c0_9 = arith.constant 0 : index
      %c0_10 = arith.constant 0 : index
      %15 = vector.load %arg16[%c0_8, %c0_9, %c0_10] : memref<1x16x128xf32, #tpu.memory_space<vmem>>, vector<1x16x128xf32>
      %16 = vector.shape_cast %15 : vector<1x16x128xf32> to vector<16x128xf32>
      %17 = vector.shape_cast %14 : vector<16x128xf32> to vector<1x16x128xf32>
      tpu.vector_store %arg16[%c0_8, %c0_9, %c0_10], %17 {strides = array<i32>} : memref<1x16x128xf32, #tpu.memory_space<vmem>>, vector<1x16x128xf32>,
    } else {
    }
    return
  }
  func.func @transform_0(%arg0: i32, %arg1: i32, %arg2: i32) -> (i32, i32, i32) {
    %c0_i32 = arith.constant 0 : i32
    %c0_i32_0 = arith.constant 0 : i32
    return %arg0, %c0_i32, %arg2 : i32, i32, i32
  }
  func.func @transform_1(%arg0: i32, %arg1: i32, %arg2: i32) -> (i32, i32, i32) {
    %c1_i32 = arith.constant 1 : i32
    %0 = arith.muli %arg1, %c1_i32 : i32
    %c1_i32_0 = arith.constant 1 : i32
    %1 = arith.subi %c1_i32_0, %arg1 : i32
    %2 = arith.muli %1, %arg2 : i32
    %3 = arith.addi %0, %2 : i32
    %c0_i32 = arith.constant 0 : i32
    %c0_i32_1 = arith.constant 0 : i32
    return %arg0, %c0_i32, %3 : i32, i32, i32
  }
  func.func @transform_2(%arg0: i32, %arg1: i32, %arg2: i32) -> (i32, i32) {
    %c0_i32 = arith.constant 0 : i32
    %c0_i32_0 = arith.constant 0 : i32
    %c0_i32_1 = arith.constant 0 : i32
    return %c0_i32, %c0_i32_0 : i32, i32
  }
  func.func @transform_3(%arg0: i32, %arg1: i32, %arg2: i32) -> (i32, i32) {
    %c0_i32 = arith.constant 0 : i32
    %c0_i32_0 = arith.constant 0 : i32
    %c0_i32_1 = arith.constant 0 : i32
    return %c0_i32, %c0_i32_0 : i32, i32
  }
  func.func @transform_4(%arg0: i32, %arg1: i32, %arg2: i32) -> (i32, i32) {
    %c0_i32 = arith.constant 0 : i32
    %c0_i32_0 = arith.constant 0 : i32
    %c0_i32_1 = arith.constant 0 : i32
    return %c0_i32, %c0_i32_0 : i32, i32
  }
  func.func @transform_5(%arg0: i32, %arg1: i32, %arg2: i32) -> (i32, i32) {
    %c0_i32 = arith.constant 0 : i32
    %c0_i32_0 = arith.constant 0 : i32
    %c0_i32_1 = arith.constant 0 : i32
    return %c0_i32, %c0_i32_0 : i32, i32
  }
  func.func @transform_6(%arg0: i32, %arg1: i32, %arg2: i32) -> (i32, i32) {
    %c0_i32 = arith.constant 0 : i32
    %c0_i32_0 = arith.constant 0 : i32
    %c0_i32_1 = arith.constant 0 : i32
    return %c0_i32, %c0_i32_0 : i32, i32
  }
  func.func @transform_7(%arg0: i32, %arg1: i32, %arg2: i32) -> (i32, i32) {
    %c0_i32 = arith.constant 0 : i32
    %c0_i32_0 = arith.constant 0 : i32
    %c0_i32_1 = arith.constant 0 : i32
    return %c0_i32, %c0_i32_0 : i32, i32
  }
  func.func @transform_8(%arg0: i32, %arg1: i32, %arg2: i32) -> (i32, i32) {
    %c0_i32 = arith.constant 0 : i32
    %c0_i32_0 = arith.constant 0 : i32
    %c0_i32_1 = arith.constant 0 : i32
    return %c0_i32, %c0_i32_0 : i32, i32
  }
  func.func @transform_9(%arg0: i32, %arg1: i32, %arg2: i32) -> (i32, i32) {
    %c0_i32 = arith.constant 0 : i32
    %c0_i32_0 = arith.constant 0 : i32
    %c0_i32_1 = arith.constant 0 : i32
    return %c0_i32, %c0_i32_0 : i32, i32
  }
  func.func @transform_10(%arg0: i32, %arg1: i32, %arg2: i32) -> (i32, i32) {
    %c0_i32 = arith.constant 0 : i32
    %c0_i32_0 = arith.constant 0 : i32
    %c0_i32_1 = arith.constant 0 : i32
    return %c0_i32, %c0_i32_0 : i32, i32
  }
  func.func @transform_11(%arg0: i32, %arg1: i32, %arg2: i32) -> (i32, i32) {
    %c0_i32 = arith.constant 0 : i32
    %c0_i32_0 = arith.constant 0 : i32
    %c0_i32_1 = arith.constant 0 : i32
    return %c0_i32, %c0_i32_0 : i32, i32
  }
  func.func @transform_12(%arg0: i32, %arg1: i32, %arg2: i32) -> (i32, i32) {
    %c0_i32 = arith.constant 0 : i32
    %c0_i32_0 = arith.constant 0 : i32
    %c0_i32_1 = arith.constant 0 : i32
    return %c0_i32, %c0_i32_0 : i32, i32
  }
  func.func @transform_13(%arg0: i32, %arg1: i32, %arg2: i32) -> (i32, i32, i32) {
    %0 = arith.muli %arg1, %arg2 : i32
    %c0_i32 = arith.constant 0 : i32
    %c0_i32_0 = arith.constant 0 : i32
    return %arg0, %c0_i32, %0 : i32, i32, i32
  }
}

</mosaic_0001>

<llo_original>
// kernel: mutual_attention.1
$region0: #{mutual_attention.1}
  #allocation0 [shape = 'u32[]', space=smem, size = 0x4, offset = 0x4, fixed_abs, tag = 'smem constant byte address 0x4 - core index']
  #allocation1 [shape = 'u32[144,128]{1,0:T(1,128)}', space=vmem, size = 0x12000, scoped, tag = 'internal scratch']
  #allocation2 [shape = 'f32[16,1]{1,0:T(8,128)}', space=vmem, size = 0x2000, scoped, tag = 'scratch operand']
  #allocation3 [shape = 'f32[16,1]{1,0:T(8,128)}', space=vmem, size = 0x2000, scoped, tag = 'scratch operand']
  #allocation4 [shape = 'f32[16,16]{1,0:T(8,128)}', space=vmem, size = 0x2000, scoped, tag = 'scratch operand']
  #allocation5 [shape = 'f32[16,16]{1,0:T(8,128)}', space=vmem, size = 0x2000, scoped, tag = 'scratch operand']
  #allocation6 [shape = 'f32[16,1]{1,0:T(8,128)}', space=vmem, size = 0x2000, scoped, tag = 'scratch operand']
  %s0 = inlined_call_operand.vmem [shape: f32[2,16,256], index: 0, kind: input, shape index: {}]
  %s1 = inlined_call_operand.vmem [shape: f32[2,16,256], index: 1, kind: input, shape index: {}]
  %s2 = inlined_call_operand.vmem [shape: f32[16,16], index: 2, kind: input, shape index: {}]
  %s3 = inlined_call_operand.vmem [shape: f32[16,1], index: 3, kind: input, shape index: {}]
  %s4 = inlined_call_operand.vmem [shape: f32[16,16], index: 4, kind: input, shape index: {}]
  %s5 = inlined_call_operand.vmem [shape: f32[16,1], index: 5, kind: input, shape index: {}]
  %s6 = inlined_call_operand.vmem [shape: f32[16,16], index: 6, kind: input, shape index: {}]
  %s7 = inlined_call_operand.vmem [shape: f32[1,16], index: 7, kind: input, shape index: {}]
  %s8 = inlined_call_operand.vmem [shape: f32[16,16], index: 8, kind: input, shape index: {}]
  %s9 = inlined_call_operand.vmem [shape: f32[16,1], index: 9, kind: input, shape index: {}]
  %s10 = inlined_call_operand.vmem [shape: f32[16,1], index: 10, kind: input, shape index: {}]
  %s11 = inlined_call_operand.vmem [shape: f32[16,16], index: 11, kind: input, shape index: {}]
  %s12 = inlined_call_operand.vmem [shape: f32[16,16], index: 12, kind: input, shape index: {}]
  %s13 = inlined_call_operand.vmem [shape: f32[2,16,256], index: 13, kind: output, shape index: {}]
  %s14 = sld [smem:[#allocation0]]
  $region211: #{mutual_attention.1} parent=0
    _
  %s16 = ssub.s32 1, %s14
  %s17 = scalar_select 0, %s16, %s14
  $region1: #{mutual_attention.1} parent=0
    #allocation7 [shape = 'u8[16384]{0}', space=vmem, size = 0x4000, scoped, tag = 'input window, operand 0']
    #allocation8 [shape = 'u8[16384]{0}', space=vmem, size = 0x4000, scoped, tag = 'input window, operand 1']
    #allocation9 [shape = 'u8[16384]{0}', space=vmem, size = 0x4000, scoped, tag = 'output window, operand 0']
    loop: start=0, step=1, limit=10
    $region2: #{mutual_attention.1} parent=1 // loop_pre_header
      _
    $region3: #{mutual_attention.1} parent=1 // loop_header
      %s19 = sphi 0, %s23
      %p20 = scmp.ge.s32.totalorder %s19, 10
      %s26 = sphi 0, %s45
      %s27 = sphi 0, %s41
      %s28 = sphi 0, %s37
      %s29 = sphi 0, %s26
      %s30 = sphi 0, %s27
      %s31 = sphi 0, %s28
      %s32 = sphi 0, %s29
      %s33 = sphi 0, %s30
      %s34 = sphi 0, %s31
      %s50 = sphi 0, %s52
      %s53 = sphi 0, %s50
      %s54 = sphi 0, %s53
      %s70 = sphi 0, %s54
      %s84 = sphi 0, %s86
      %s87 = sphi 0, %s84
      %s88 = sphi 0, %s87
      %s104 = sphi 0, %s88
      %s108 = sphi 0, %s108
      %s110 = sphi 0, %s108
      %s111 = sphi 0, %s110
      %s125 = sphi 0, %s111
      %s129 = sphi 0, %s129
      %s131 = sphi 0, %s129
      %s132 = sphi 0, %s131
      %s146 = sphi 0, %s132
      %s150 = sphi 0, %s150
      %s152 = sphi 0, %s150
      %s153 = sphi 0, %s152
      %s167 = sphi 0, %s153
      %s171 = sphi 0, %s171
      %s173 = sphi 0, %s171
      %s174 = sphi 0, %s173
      %s188 = sphi 0, %s174
      %s192 = sphi 0, %s192
      %s194 = sphi 0, %s192
      %s195 = sphi 0, %s194
      %s209 = sphi 0, %s195
      %s213 = sphi 0, %s213
      %s215 = sphi 0, %s213
      %s216 = sphi 0, %s215
      %s230 = sphi 0, %s216
      %s234 = sphi 0, %s234
      %s236 = sphi 0, %s234
      %s237 = sphi 0, %s236
      %s251 = sphi 0, %s237
      %s255 = sphi 0, %s255
      %s257 = sphi 0, %s255
      %s258 = sphi 0, %s257
      %s272 = sphi 0, %s258
      %s276 = sphi 0, %s276
      %s278 = sphi 0, %s276
      %s279 = sphi 0, %s278
      %s293 = sphi 0, %s279
      %s297 = sphi 0, %s297
      %s299 = sphi 0, %s297
      %s300 = sphi 0, %s299
      %s314 = sphi 0, %s300
      %s318 = sphi 0, %s318
      %s320 = sphi 0, %s318
      %s321 = sphi 0, %s320
      %s335 = sphi 0, %s321
      %s345 = sphi 0, %s347
      %s348 = sphi 0, %s345
      %s349 = sphi 0, %s348
      %s365 = sphi 0, %s349
    $region4: #{mutual_attention.1} parent=1 // loop_header_branch
      %22 = sbr.rel (%p20) target = $region8
    $region5: #{mutual_attention.1} parent=1 // loop_body
      %s24 = ssub.s32 %s19, 1
      %s25 = ssub.s32 %s19, 2
      %s35 = sadd.s32 1, %s28
      %p36 = scmp.ge.s32.totalorder %s35, 2
      %s37 = scalar_select %p36, 0, %s35
      %s38 = sadd.s32 1, %s27
      %s39 = scalar_select %p36, %s38, %s27
      %p40 = scmp.ge.s32.totalorder %s39, 2
      %s41 = scalar_select %p40, 0, %s39
      %s42 = sadd.s32 1, %s26
      %s43 = scalar_select %p40, %s42, %s26
      %p44 = scmp.ge.s32.totalorder %s43, 2
      %s45 = scalar_select %p44, 0, %s43
      %s46 = ssub.s32 %s26, %s45
      %s47 = ssub.s32 %s28, %s37
      %s48 = sor.u32 %s46, %s47
      %p49 = scmp.eq.s32.totalorder %s48, 0
      %s51 = sadd.s32 %s50, 1
      %s52 = scalar_select %p49, %s50, %s51
      %p55 = pneg %p49
      %p56 = scmp.eq.s32.totalorder %s19, 7
      %p57 = por %p55, %p56
      %p58 = scmp.ne.s32.totalorder %s50, %s53
      %p59 = scmp.eq.s32.totalorder %s19, 0
      %p60 = por %p58, %p59
      %p61 = scmp.ne.s32.totalorder %s50, %s53
      %p62 = scmp.eq.s32.totalorder %s24, 7
      %p63 = por %p61, %p62
      %p64 = scmp.ne.s32.totalorder %s53, %s54
      %p65 = scmp.eq.s32.totalorder %s24, 0
      %p66 = por %p64, %p65
      %p67 = scmp.ne.s32.totalorder %s53, %s54
      %p68 = scmp.eq.s32.totalorder %s25, 7
      %p69 = por %p67, %p68
      %p71 = scmp.ne.s32.totalorder %s54, %s70
      %p72 = scmp.eq.s32.totalorder %s25, 0
      %p73 = por %p71, %p72
      %s74 = ssub.s32 1, %s27
      %s75 = smul.u32 %s74, %s28
      %s76 = sadd.s32 %s27, %s75
      %s77 = ssub.s32 1, %s41
      %s78 = smul.u32 %s77, %s37
      %s79 = sadd.s32 %s41, %s78
      %s80 = ssub.s32 %s26, %s45
      %s81 = ssub.s32 %s76, %s79
      %s82 = sor.u32 %s80, %s81
      %p83 = scmp.eq.s32.totalorder %s82, 0
      %s85 = sadd.s32 %s84, 1
      %s86 = scalar_select %p83, %s84, %s85
      %p89 = pneg %p83
      %p90 = scmp.eq.s32.totalorder %s19, 7
      %p91 = por %p89, %p90
      %p92 = scmp.ne.s32.totalorder %s84, %s87
      %p93 = scmp.eq.s32.totalorder %s19, 0
      %p94 = por %p92, %p93
      %p95 = scmp.ne.s32.totalorder %s84, %s87
      %p96 = scmp.eq.s32.totalorder %s24, 7
      %p97 = por %p95, %p96
      %p98 = scmp.ne.s32.totalorder %s87, %s88
      %p99 = scmp.eq.s32.totalorder %s24, 0
      %p100 = por %p98, %p99
      %p101 = scmp.ne.s32.totalorder %s87, %s88
      %p102 = scmp.eq.s32.totalorder %s25, 7
      %p103 = por %p101, %p102
      %p105 = scmp.ne.s32.totalorder %s88, %s104
      %p106 = scmp.eq.s32.totalorder %s25, 0
      %p107 = por %p105, %p106
      %s109 = sadd.s32 %s108, 1
      %p112 = scmp.eq.s32.totalorder %s19, 7
      %p113 = scmp.ne.s32.totalorder %s108, %s110
      %p114 = scmp.eq.s32.totalorder %s19, 0
      %p115 = por %p113, %p114
      %p116 = scmp.ne.s32.totalorder %s108, %s110
      %p117 = scmp.eq.s32.totalorder %s24, 7
      %p118 = por %p116, %p117
      %p119 = scmp.ne.s32.totalorder %s110, %s111
      %p120 = scmp.eq.s32.totalorder %s24, 0
      %p121 = por %p119, %p120
      %p122 = scmp.ne.s32.totalorder %s110, %s111
      %p123 = scmp.eq.s32.totalorder %s25, 7
      %p124 = por %p122, %p123
      %p126 = scmp.ne.s32.totalorder %s111, %s125
      %p127 = scmp.eq.s32.totalorder %s25, 0
      %p128 = por %p126, %p127
      %s130 = sadd.s32 %s129, 1
      %p133 = scmp.eq.s32.totalorder %s19, 7
      %p134 = scmp.ne.s32.totalorder %s129, %s131
      %p135 = scmp.eq.s32.totalorder %s19, 0
      %p136 = por %p134, %p135
      %p137 = scmp.ne.s32.totalorder %s129, %s131
      %p138 = scmp.eq.s32.totalorder %s24, 7
      %p139 = por %p137, %p138
      %p140 = scmp.ne.s32.totalorder %s131, %s132
      %p141 = scmp.eq.s32.totalorder %s24, 0
      %p142 = por %p140, %p141
      %p143 = scmp.ne.s32.totalorder %s131, %s132
      %p144 = scmp.eq.s32.totalorder %s25, 7
      %p145 = por %p143, %p144
      %p147 = scmp.ne.s32.totalorder %s132, %s146
      %p148 = scmp.eq.s32.totalorder %s25, 0
      %p149 = por %p147, %p148
      %s151 = sadd.s32 %s150, 1
      %p154 = scmp.eq.s32.totalorder %s19, 7
      %p155 = scmp.ne.s32.totalorder %s150, %s152
      %p156 = scmp.eq.s32.totalorder %s19, 0
      %p157 = por %p155, %p156
      %p158 = scmp.ne.s32.totalorder %s150, %s152
      %p159 = scmp.eq.s32.totalorder %s24, 7
      %p160 = por %p158, %p159
      %p161 = scmp.ne.s32.totalorder %s152, %s153
      %p162 = scmp.eq.s32.totalorder %s24, 0
      %p163 = por %p161, %p162
      %p164 = scmp.ne.s32.totalorder %s152, %s153
      %p165 = scmp.eq.s32.totalorder %s25, 7
      %p166 = por %p164, %p165
      %p168 = scmp.ne.s32.totalorder %s153, %s167
      %p169 = scmp.eq.s32.totalorder %s25, 0
      %p170 = por %p168, %p169
      %s172 = sadd.s32 %s171, 1
      %p175 = scmp.eq.s32.totalorder %s19, 7
      %p176 = scmp.ne.s32.totalorder %s171, %s173
      %p177 = scmp.eq.s32.totalorder %s19, 0
      %p178 = por %p176, %p177
      %p179 = scmp.ne.s32.totalorder %s171, %s173
      %p180 = scmp.eq.s32.totalorder %s24, 7
      %p181 = por %p179, %p180
      %p182 = scmp.ne.s32.totalorder %s173, %s174
      %p183 = scmp.eq.s32.totalorder %s24, 0
      %p184 = por %p182, %p183
      %p185 = scmp.ne.s32.totalorder %s173, %s174
      %p186 = scmp.eq.s32.totalorder %s25, 7
      %p187 = por %p185, %p186
      %p189 = scmp.ne.s32.totalorder %s174, %s188
      %p190 = scmp.eq.s32.totalorder %s25, 0
      %p191 = por %p189, %p190
      %s193 = sadd.s32 %s192, 1
      %p196 = scmp.eq.s32.totalorder %s19, 7
      %p197 = scmp.ne.s32.totalorder %s192, %s194
      %p198 = scmp.eq.s32.totalorder %s19, 0
      %p199 = por %p197, %p198
      %p200 = scmp.ne.s32.totalorder %s192, %s194
      %p201 = scmp.eq.s32.totalorder %s24, 7
      %p202 = por %p200, %p201
      %p203 = scmp.ne.s32.totalorder %s194, %s195
      %p204 = scmp.eq.s32.totalorder %s24, 0
      %p205 = por %p203, %p204
      %p206 = scmp.ne.s32.totalorder %s194, %s195
      %p207 = scmp.eq.s32.totalorder %s25, 7
      %p208 = por %p206, %p207
      %p210 = scmp.ne.s32.totalorder %s195, %s209
      %p211 = scmp.eq.s32.totalorder %s25, 0
      %p212 = por %p210, %p211
      %s214 = sadd.s32 %s213, 1
      %p217 = scmp.eq.s32.totalorder %s19, 7
      %p218 = scmp.ne.s32.totalorder %s213, %s215
      %p219 = scmp.eq.s32.totalorder %s19, 0
      %p220 = por %p218, %p219
      %p221 = scmp.ne.s32.totalorder %s213, %s215
      %p222 = scmp.eq.s32.totalorder %s24, 7
      %p223 = por %p221, %p222
      %p224 = scmp.ne.s32.totalorder %s215, %s216
      %p225 = scmp.eq.s32.totalorder %s24, 0
      %p226 = por %p224, %p225
      %p227 = scmp.ne.s32.totalorder %s215, %s216
      %p228 = scmp.eq.s32.totalorder %s25, 7
      %p229 = por %p227, %p228
      %p231 = scmp.ne.s32.totalorder %s216, %s230
      %p232 = scmp.eq.s32.totalorder %s25, 0
      %p233 = por %p231, %p232
      %s235 = sadd.s32 %s234, 1
      %p238 = scmp.eq.s32.totalorder %s19, 7
      %p239 = scmp.ne.s32.totalorder %s234, %s236
      %p240 = scmp.eq.s32.totalorder %s19, 0
      %p241 = por %p239, %p240
      %p242 = scmp.ne.s32.totalorder %s234, %s236
      %p243 = scmp.eq.s32.totalorder %s24, 7
      %p244 = por %p242, %p243
      %p245 = scmp.ne.s32.totalorder %s236, %s237
      %p246 = scmp.eq.s32.totalorder %s24, 0
      %p247 = por %p245, %p246
      %p248 = scmp.ne.s32.totalorder %s236, %s237
      %p249 = scmp.eq.s32.totalorder %s25, 7
      %p250 = por %p248, %p249
      %p252 = scmp.ne.s32.totalorder %s237, %s251
      %p253 = scmp.eq.s32.totalorder %s25, 0
      %p254 = por %p252, %p253
      %s256 = sadd.s32 %s255, 1
      %p259 = scmp.eq.s32.totalorder %s19, 7
      %p260 = scmp.ne.s32.totalorder %s255, %s257
      %p261 = scmp.eq.s32.totalorder %s19, 0
      %p262 = por %p260, %p261
      %p263 = scmp.ne.s32.totalorder %s255, %s257
      %p264 = scmp.eq.s32.totalorder %s24, 7
      %p265 = por %p263, %p264
      %p266 = scmp.ne.s32.totalorder %s257, %s258
      %p267 = scmp.eq.s32.totalorder %s24, 0
      %p268 = por %p266, %p267
      %p269 = scmp.ne.s32.totalorder %s257, %s258
      %p270 = scmp.eq.s32.totalorder %s25, 7
      %p271 = por %p269, %p270
      %p273 = scmp.ne.s32.totalorder %s258, %s272
      %p274 = scmp.eq.s32.totalorder %s25, 0
      %p275 = por %p273, %p274
      %s277 = sadd.s32 %s276, 1
      %p280 = scmp.eq.s32.totalorder %s19, 7
      %p281 = scmp.ne.s32.totalorder %s276, %s278
      %p282 = scmp.eq.s32.totalorder %s19, 0
      %p283 = por %p281, %p282
      %p284 = scmp.ne.s32.totalorder %s276, %s278
      %p285 = scmp.eq.s32.totalorder %s24, 7
      %p286 = por %p284, %p285
      %p287 = scmp.ne.s32.totalorder %s278, %s279
      %p288 = scmp.eq.s32.totalorder %s24, 0
      %p289 = por %p287, %p288
      %p290 = scmp.ne.s32.totalorder %s278, %s279
      %p291 = scmp.eq.s32.totalorder %s25, 7
      %p292 = por %p290, %p291
      %p294 = scmp.ne.s32.totalorder %s279, %s293
      %p295 = scmp.eq.s32.totalorder %s25, 0
      %p296 = por %p294, %p295
      %s298 = sadd.s32 %s297, 1
      %p301 = scmp.eq.s32.totalorder %s19, 7
      %p302 = scmp.ne.s32.totalorder %s297, %s299
      %p303 = scmp.eq.s32.totalorder %s19, 0
      %p304 = por %p302, %p303
      %p305 = scmp.ne.s32.totalorder %s297, %s299
      %p306 = scmp.eq.s32.totalorder %s24, 7
      %p307 = por %p305, %p306
      %p308 = scmp.ne.s32.totalorder %s299, %s300
      %p309 = scmp.eq.s32.totalorder %s24, 0
      %p310 = por %p308, %p309
      %p311 = scmp.ne.s32.totalorder %s299, %s300
      %p312 = scmp.eq.s32.totalorder %s25, 7
      %p313 = por %p311, %p312
      %p315 = scmp.ne.s32.totalorder %s300, %s314
      %p316 = scmp.eq.s32.totalorder %s25, 0
      %p317 = por %p315, %p316
      %s319 = sadd.s32 %s318, 1
      %p322 = scmp.eq.s32.totalorder %s19, 7
      %p323 = scmp.ne.s32.totalorder %s318, %s320
      %p324 = scmp.eq.s32.totalorder %s19, 0
      %p325 = por %p323, %p324
      %p326 = scmp.ne.s32.totalorder %s318, %s320
      %p327 = scmp.eq.s32.totalorder %s24, 7
      %p328 = por %p326, %p327
      %p329 = scmp.ne.s32.totalorder %s320, %s321
      %p330 = scmp.eq.s32.totalorder %s24, 0
      %p331 = por %p329, %p330
      %p332 = scmp.ne.s32.totalorder %s320, %s321
      %p333 = scmp.eq.s32.totalorder %s25, 7
      %p334 = por %p332, %p333
      %p336 = scmp.ne.s32.totalorder %s321, %s335
      %p337 = scmp.eq.s32.totalorder %s25, 0
      %p338 = por %p336, %p337
      %s339 = smul.u32 %s27, %s28
      %s340 = smul.u32 %s41, %s37
      %s341 = ssub.s32 %s26, %s45
      %s342 = ssub.s32 %s339, %s340
      %s343 = sor.u32 %s341, %s342
      %p344 = scmp.eq.s32.totalorder %s343, 0
      %s346 = sadd.s32 %s345, 1
      %s347 = scalar_select %p344, %s345, %s346
      %p350 = pneg %p344
      %p351 = scmp.eq.s32.totalorder %s19, 7
      %p352 = por %p350, %p351
      %p353 = scmp.ne.s32.totalorder %s345, %s348
      %p354 = scmp.eq.s32.totalorder %s19, 0
      %p355 = por %p353, %p354
      %p356 = scmp.ne.s32.totalorder %s345, %s348
      %p357 = scmp.eq.s32.totalorder %s24, 7
      %p358 = por %p356, %p357
      %p359 = scmp.ne.s32.totalorder %s348, %s349
      %p360 = scmp.eq.s32.totalorder %s24, 0
      %p361 = por %p359, %p360
      %p362 = scmp.ne.s32.totalorder %s348, %s349
      %p363 = scmp.eq.s32.totalorder %s25, 7
      %p364 = por %p362, %p363
      %p366 = scmp.ne.s32.totalorder %s349, %s365
      %p367 = scmp.eq.s32.totalorder %s25, 0
      %p368 = por %p366, %p367
      %p369 = scmp.le.s32.totalorder 1, %s19
      %p370 = scmp.lt.s32.totalorder %s19, 9
      %p371 = pnand %p369, %p370
      %p372 = pneg %p371
      // Predicated region
      $region9: #{mutual_attention.1} parent=5 // pred_check
        _
      $region10: #{mutual_attention.1} parent=5 // pred_check_branch
        %374 = sbr.rel (%p371) target = $region12
      $region11: #{mutual_attention.1} parent=5 // pred_region
        %s375 = ssub.s32 %s19, 1
        // Predicated region
        $region13: #{mutual_attention.1} parent=11 // pred_check
          %p376 = pneg %p121
        $region14: #{mutual_attention.1} parent=11 // pred_check_branch
          %378 = sbr.rel (%p376) target = $region16
        $region15: #{mutual_attention.1} parent=11 // pred_region
          _
        $region16: #{mutual_attention.1} parent=11 // pred_fallthru
          _
        // Predicated region
        $region17: #{mutual_attention.1} parent=11 // pred_check
          %p379 = pneg %p142
        $region18: #{mutual_attention.1} parent=11 // pred_check_branch
          %381 = sbr.rel (%p379) target = $region20
        $region19: #{mutual_attention.1} parent=11 // pred_region
          _
        $region20: #{mutual_attention.1} parent=11 // pred_fallthru
          _
        // Predicated region
        $region21: #{mutual_attention.1} parent=11 // pred_check
          %p382 = pneg %p163
        $region22: #{mutual_attention.1} parent=11 // pred_check_branch
          %384 = sbr.rel (%p382) target = $region24
        $region23: #{mutual_attention.1} parent=11 // pred_region
          _
        $region24: #{mutual_attention.1} parent=11 // pred_fallthru
          _
        // Predicated region
        $region25: #{mutual_attention.1} parent=11 // pred_check
          %p385 = pneg %p184
        $region26: #{mutual_attention.1} parent=11 // pred_check_branch
          %387 = sbr.rel (%p385) target = $region28
        $region27: #{mutual_attention.1} parent=11 // pred_region
          _
        $region28: #{mutual_attention.1} parent=11 // pred_fallthru
          _
        // Predicated region
        $region29: #{mutual_attention.1} parent=11 // pred_check
          %p388 = pneg %p205
        $region30: #{mutual_attention.1} parent=11 // pred_check_branch
          %390 = sbr.rel (%p388) target = $region32
        $region31: #{mutual_attention.1} parent=11 // pred_region
          _
        $region32: #{mutual_attention.1} parent=11 // pred_fallthru
          _
        // Predicated region
        $region33: #{mutual_attention.1} parent=11 // pred_check
          %p391 = pneg %p226
        $region34: #{mutual_attention.1} parent=11 // pred_check_branch
          %393 = sbr.rel (%p391) target = $region36
        $region35: #{mutual_attention.1} parent=11 // pred_region
          _
        $region36: #{mutual_attention.1} parent=11 // pred_fallthru
          _
        // Predicated region
        $region37: #{mutual_attention.1} parent=11 // pred_check
          %p394 = pneg %p247
        $region38: #{mutual_attention.1} parent=11 // pred_check_branch
          %396 = sbr.rel (%p394) target = $region40
        $region39: #{mutual_attention.1} parent=11 // pred_region
          _
        $region40: #{mutual_attention.1} parent=11 // pred_fallthru
          _
        // Predicated region
        $region41: #{mutual_attention.1} parent=11 // pred_check
          %p397 = pneg %p268
        $region42: #{mutual_attention.1} parent=11 // pred_check_branch
          %399 = sbr.rel (%p397) target = $region44
        $region43: #{mutual_attention.1} parent=11 // pred_region
          _
        $region44: #{mutual_attention.1} parent=11 // pred_fallthru
          _
        // Predicated region
        $region45: #{mutual_attention.1} parent=11 // pred_check
          %p400 = pneg %p289
        $region46: #{mutual_attention.1} parent=11 // pred_check_branch
          %402 = sbr.rel (%p400) target = $region48
        $region47: #{mutual_attention.1} parent=11 // pred_region
          _
        $region48: #{mutual_attention.1} parent=11 // pred_fallthru
          _
        // Predicated region
        $region49: #{mutual_attention.1} parent=11 // pred_check
          %p403 = pneg %p310
        $region50: #{mutual_attention.1} parent=11 // pred_check_branch
          %405 = sbr.rel (%p403) target = $region52
        $region51: #{mutual_attention.1} parent=11 // pred_region
          _
        $region52: #{mutual_attention.1} parent=11 // pred_fallthru
          _
        // Predicated region
        $region53: #{mutual_attention.1} parent=11 // pred_check
          %p406 = pneg %p331
        $region54: #{mutual_attention.1} parent=11 // pred_check_branch
          %408 = sbr.rel (%p406) target = $region56
        $region55: #{mutual_attention.1} parent=11 // pred_region
          _
        $region56: #{mutual_attention.1} parent=11 // pred_fallthru
          _
      $region12: #{mutual_attention.1} parent=5 // pred_fallthru
        _
      %p409 = scmp.lt.s32.totalorder %s19, 8
      // Predicated region
      $region57: #{mutual_attention.1} parent=5 // pred_check
        %p410 = pneg %p409
      $region58: #{mutual_attention.1} parent=5 // pred_check_branch
        %412 = sbr.rel (%p410) target = $region60
      $region59: #{mutual_attention.1} parent=5 // pred_region
        // Predicated region
        $region61: #{mutual_attention.1} parent=59 // pred_check
          %p413 = pneg %p60
        $region62: #{mutual_attention.1} parent=59 // pred_check_branch
          %415 = sbr.rel (%p413) target = $region64
        $region63: #{mutual_attention.1} parent=59 // pred_region
          %s416 = sand.u32 %s50, 1
          %s417 = sand.u32 %s50, 1
          %s418 = smul.addr %s417, 16
          %s419 = scalar_lea.vmem [#allocation7], %s418
          %s420 = smul.addr %s26, 4
          %s421 = sadd.s32 %s28, %s420
          %s422 = smul.addr %s421, 8
          %s423 = scalar_lea.vmem %s0, %s422
          // Predicated region
          $region65: #{mutual_attention.1} parent=63 // pred_check
            _
          $region66: #{mutual_attention.1} parent=63 // pred_check_branch
            %425 = sbr.rel (0) target = $region68
          $region67: #{mutual_attention.1} parent=63 // pred_region
            // Predicated region
            $region69: #{mutual_attention.1} parent=67 // pred_check
              _
            $region70: #{mutual_attention.1} parent=67 // pred_check_branch
              %427 = sbr.rel (0) target = $region72
            $region71: #{mutual_attention.1} parent=67 // pred_region
              // Predicated region
              $region84: #{mutual_attention.1} parent=71 // pred_check
                _
              $region85: #{mutual_attention.1} parent=71 // pred_check_branch
                %445 = sbr.rel (0) target = $region87
              $region86: #{mutual_attention.1} parent=71 // pred_region
                loop: start=0, step=1, limit=1
                $region88: #{mutual_attention.1} parent=86 // loop_pre_header
                  _
                $region89: #{mutual_attention.1} parent=86 // loop_header
                  %s447 = sphi 0, %s451
                  %p448 = scmp.ge.s32.totalorder %s447, 1
                  %s452 = sphi %s423, %s423
                  %s453 = sphi %s419, %s419
                $region90: #{mutual_attention.1} parent=86 // loop_header_branch
                  %450 = sbr.rel (%p448) target = $region94
                $region91: #{mutual_attention.1} parent=86 // loop_body
                  %v454 = vld [vmem:[%s452] sm:$0xff]
                  %455 = vst [vmem:[%s453] sm:$0xff] %v454
                  %v456 = vld [vmem:[%s452 + $0x10] sm:$0xff]
                  %457 = vst [vmem:[%s453 + $0x8] sm:$0xff] %v456
                $region92: #{mutual_attention.1} parent=86 // loop_footer
                  %s451 = sadd.s32 1, %s447
                $region93: #{mutual_attention.1} parent=86 // loop_footer_branch
                  %446 = sbr.rel target = $region89
                $region94: #{mutual_attention.1} parent=86 // loop_exit
                  _
              $region87: #{mutual_attention.1} parent=71 // pred_fallthru
                _
              // Predicated region
              $region95: #{mutual_attention.1} parent=71 // pred_check
                _
              $region96: #{mutual_attention.1} parent=71 // pred_check_branch
                %459 = sbr.rel target = $region98
              $region97: #{mutual_attention.1} parent=71 // pred_region
                _
              $region98: #{mutual_attention.1} parent=71 // pred_fallthru
                _
            $region72: #{mutual_attention.1} parent=67 // pred_fallthru
              _
            // Predicated region
            $region73: #{mutual_attention.1} parent=67 // pred_check
              _
            $region74: #{mutual_attention.1} parent=67 // pred_check_branch
              %429 = sbr.rel target = $region76
            $region75: #{mutual_attention.1} parent=67 // pred_region
              %s431 = ssub.s32 256, 1
              loop: start=0, step=1, limit=1
              $region77: #{mutual_attention.1} parent=75 // loop_pre_header
                _
              $region78: #{mutual_attention.1} parent=75 // loop_header
                %s433 = sphi 0, %s437
                %p434 = scmp.ge.s32.totalorder %s433, 1
                %s438 = sphi %s423, %s423
                %s439 = sphi %s419, %s419
              $region79: #{mutual_attention.1} parent=75 // loop_header_branch
                %436 = sbr.rel (%p434) target = $region83
              $region80: #{mutual_attention.1} parent=75 // loop_body
                %v440 = vld [vmem:[%s438] sm:%s431]
                %441 = vst [vmem:[%s439] sm:%s431] %v440
                %v442 = vld [vmem:[%s438 + $0x10] sm:%s431]
                %443 = vst [vmem:[%s439 + $0x8] sm:%s431] %v442
              $region81: #{mutual_attention.1} parent=75 // loop_footer
                %s437 = sadd.s32 1, %s433
              $region82: #{mutual_attention.1} parent=75 // loop_footer_branch
                %432 = sbr.rel target = $region78
              $region83: #{mutual_attention.1} parent=75 // loop_exit
                _
            $region76: #{mutual_attention.1} parent=67 // pred_fallthru
              _
          $region68: #{mutual_attention.1} parent=63 // pred_fallthru
            _
          %460 = vnop
        $region64: #{mutual_attention.1} parent=59 // pred_fallthru
          _
        // Predicated region
        $region99: #{mutual_attention.1} parent=59 // pred_check
          %p461 = pneg %p94
        $region100: #{mutual_attention.1} parent=59 // pred_check_branch
          %463 = sbr.rel (%p461) target = $region102
        $region101: #{mutual_attention.1} parent=59 // pred_region
          %s464 = sand.u32 %s84, 1
          %s465 = sand.u32 %s84, 1
          %s466 = smul.addr %s465, 16
          %s467 = scalar_lea.vmem [#allocation8], %s466
          %s468 = ssub.s32 1, %s27
          %s469 = smul.u32 %s468, %s28
          %s470 = sadd.s32 %s27, %s469
          %s471 = smul.addr %s26, 4
          %s472 = sadd.s32 %s470, %s471
          %s473 = smul.addr %s472, 8
          %s474 = scalar_lea.vmem %s1, %s473
          // Predicated region
          $region103: #{mutual_attention.1} parent=101 // pred_check
            _
          $region104: #{mutual_attention.1} parent=101 // pred_check_branch
            %476 = sbr.rel (0) target = $region106
          $region105: #{mutual_attention.1} parent=101 // pred_region
            // Predicated region
            $region107: #{mutual_attention.1} parent=105 // pred_check
              _
            $region108: #{mutual_attention.1} parent=105 // pred_check_branch
              %478 = sbr.rel (0) target = $region110
            $region109: #{mutual_attention.1} parent=105 // pred_region
              // Predicated region
              $region122: #{mutual_attention.1} parent=109 // pred_check
                _
              $region123: #{mutual_attention.1} parent=109 // pred_check_branch
                %496 = sbr.rel (0) target = $region125
              $region124: #{mutual_attention.1} parent=109 // pred_region
                loop: start=0, step=1, limit=1
                $region126: #{mutual_attention.1} parent=124 // loop_pre_header
                  _
                $region127: #{mutual_attention.1} parent=124 // loop_header
                  %s498 = sphi 0, %s502
                  %p499 = scmp.ge.s32.totalorder %s498, 1
                  %s503 = sphi %s474, %s474
                  %s504 = sphi %s467, %s467
                $region128: #{mutual_attention.1} parent=124 // loop_header_branch
                  %501 = sbr.rel (%p499) target = $region132
                $region129: #{mutual_attention.1} parent=124 // loop_body
                  %v505 = vld [vmem:[%s503] sm:$0xff]
                  %506 = vst [vmem:[%s504] sm:$0xff] %v505
                  %v507 = vld [vmem:[%s503 + $0x10] sm:$0xff]
                  %508 = vst [vmem:[%s504 + $0x8] sm:$0xff] %v507
                $region130: #{mutual_attention.1} parent=124 // loop_footer
                  %s502 = sadd.s32 1, %s498
                $region131: #{mutual_attention.1} parent=124 // loop_footer_branch
                  %497 = sbr.rel target = $region127
                $region132: #{mutual_attention.1} parent=124 // loop_exit
                  _
              $region125: #{mutual_attention.1} parent=109 // pred_fallthru
                _
              // Predicated region
              $region133: #{mutual_attention.1} parent=109 // pred_check
                _
              $region134: #{mutual_attention.1} parent=109 // pred_check_branch
                %510 = sbr.rel target = $region136
              $region135: #{mutual_attention.1} parent=109 // pred_region
                _
              $region136: #{mutual_attention.1} parent=109 // pred_fallthru
                _
            $region110: #{mutual_attention.1} parent=105 // pred_fallthru
              _
            // Predicated region
            $region111: #{mutual_attention.1} parent=105 // pred_check
              _
            $region112: #{mutual_attention.1} parent=105 // pred_check_branch
              %480 = sbr.rel target = $region114
            $region113: #{mutual_attention.1} parent=105 // pred_region
              %s482 = ssub.s32 256, 1
              loop: start=0, step=1, limit=1
              $region115: #{mutual_attention.1} parent=113 // loop_pre_header
                _
              $region116: #{mutual_attention.1} parent=113 // loop_header
                %s484 = sphi 0, %s488
                %p485 = scmp.ge.s32.totalorder %s484, 1
                %s489 = sphi %s474, %s474
                %s490 = sphi %s467, %s467
              $region117: #{mutual_attention.1} parent=113 // loop_header_branch
                %487 = sbr.rel (%p485) target = $region121
              $region118: #{mutual_attention.1} parent=113 // loop_body
                %v491 = vld [vmem:[%s489] sm:%s482]
                %492 = vst [vmem:[%s490] sm:%s482] %v491
                %v493 = vld [vmem:[%s489 + $0x10] sm:%s482]
                %494 = vst [vmem:[%s490 + $0x8] sm:%s482] %v493
              $region119: #{mutual_attention.1} parent=113 // loop_footer
                %s488 = sadd.s32 1, %s484
              $region120: #{mutual_attention.1} parent=113 // loop_footer_branch
                %483 = sbr.rel target = $region116
              $region121: #{mutual_attention.1} parent=113 // loop_exit
                _
            $region114: #{mutual_attention.1} parent=105 // pred_fallthru
              _
          $region106: #{mutual_attention.1} parent=101 // pred_fallthru
            _
          %511 = vnop
        $region102: #{mutual_attention.1} parent=59 // pred_fallthru
          _
      $region60: #{mutual_attention.1} parent=5 // pred_fallthru
        _
      %p512 = scmp.le.s32.totalorder 1, %s19
      %p513 = scmp.lt.s32.totalorder %s19, 9
      %p514 = pnand %p512, %p513
      %p515 = pneg %p514
      // Predicated region
      $region137: #{mutual_attention.1} parent=5 // pred_check
        _
      $region138: #{mutual_attention.1} parent=5 // pred_check_branch
        %517 = sbr.rel (%p514) target = $region140
      $region139: #{mutual_attention.1} parent=5 // pred_region
        %s518 = ssub.s32 %s19, 1
        %s519 = sand.u32 %s53, 1
        %s520 = sand.u32 %s53, 1
        %s521 = smul.addr %s520, 16
        %s522 = scalar_lea.vmem [#allocation7], %s521
        // Predicated region
        $region141: #{mutual_attention.1} parent=139 // pred_check
          %p523 = pneg %p66
        $region142: #{mutual_attention.1} parent=139 // pred_check_branch
          %525 = sbr.rel (%p523) target = $region144
        $region143: #{mutual_attention.1} parent=139 // pred_region
          _
        $region144: #{mutual_attention.1} parent=139 // pred_fallthru
          _
        %s526 = sand.u32 %s87, 1
        %s527 = sand.u32 %s87, 1
        %s528 = smul.addr %s527, 16
        %s529 = scalar_lea.vmem [#allocation8], %s528
        // Predicated region
        $region145: #{mutual_attention.1} parent=139 // pred_check
          %p530 = pneg %p100
        $region146: #{mutual_attention.1} parent=139 // pred_check_branch
          %532 = sbr.rel (%p530) target = $region148
        $region147: #{mutual_attention.1} parent=139 // pred_region
          _
        $region148: #{mutual_attention.1} parent=139 // pred_fallthru
          _
        %s533 = sand.u32 %s53, 1
        %s534 = sand.u32 %s53, 1
        %s535 = smul.addr %s534, 16
        %s536 = scalar_lea.vmem [#allocation7], %s535
        %p537 = pneg %p66
        %p538 = pneg %p63
        %s539 = sand.u32 %s87, 1
        %s540 = sand.u32 %s87, 1
        %s541 = smul.addr %s540, 16
        %s542 = scalar_lea.vmem [#allocation8], %s541
        %p543 = pneg %p100
        %p544 = pneg %p97
        %p545 = pneg %p121
        %p546 = pneg %p118
        %p547 = pneg %p142
        %p548 = pneg %p139
        %p549 = pneg %p163
        %p550 = pneg %p160
        %p551 = pneg %p184
        %p552 = pneg %p181
        %p553 = pneg %p205
        %p554 = pneg %p202
        %p555 = pneg %p226
        %p556 = pneg %p223
        %p557 = pneg %p247
        %p558 = pneg %p244
        %p559 = pneg %p268
        %p560 = pneg %p265
        %p561 = pneg %p289
        %p562 = pneg %p286
        %p563 = pneg %p310
        %p564 = pneg %p307
        %p565 = pneg %p331
        %p566 = pneg %p328
        %p567 = pneg %p361
        %p568 = pneg %p358
        %s569 = sand.u32 %s348, 1
        %s570 = sand.u32 %s348, 1
        %s571 = smul.addr %s570, 16
        %s572 = scalar_lea.vmem [#allocation9], %s571
        %s573 = ssub.s32 1, %s30
        %s574 = smul.u32 %s573, %s31
        %s575 = sadd.s32 %s30, %s574
        %s576 = smul.u32 %s30, %s31
        %p578 = scmp.eq.s32.totalorder %s30, 0
        // Predicated region
        $region149: #{mutual_attention.1} parent=139 // pred_check
          %p579 = pneg %p578
        $region150: #{mutual_attention.1} parent=139 // pred_check_branch
          %581 = sbr.rel (%p579) target = $region152
        $region151: #{mutual_attention.1} parent=139 // pred_region
          %p582 = scmp.eq.s32.totalorder %s31, 0
          // Predicated region
          $region153: #{mutual_attention.1} parent=151 // pred_check
            %p583 = pneg %p582
          $region154: #{mutual_attention.1} parent=151 // pred_check_branch
            %585 = sbr.rel (%p583) target = $region156
          $region155: #{mutual_attention.1} parent=151 // pred_region
            %vm586 = vcmask 7168
            %587 = vst.msk [vmem:[#allocation2] sm:$0xff] %vm586, 0.0
            %588 = vst.msk [vmem:[#allocation2 + $0x8] sm:$0xff] %vm586, 0.0
            %589 = vst.msk [vmem:[#allocation3] sm:$0xff] %vm586, 0.0
            %590 = vst.msk [vmem:[#allocation3 + $0x8] sm:$0xff] %vm586, 0.0
            %vm591 = vcmask 130048
            %592 = vst.msk [vmem:[#allocation4] sm:$0xff] %vm591, 0.0
            %593 = vst.msk [vmem:[#allocation4 + $0x8] sm:$0xff] %vm591, 0.0
          $region156: #{mutual_attention.1} parent=151 // pred_fallthru
            _
          %v594 = vld [vmem:[%s522] sm:$0xff]
          %v595 = vld [vmem:[%s522 + $0x8] sm:$0xff]
          %v596 = vld [vmem:[%s529] sm:$0xff]
          %v597 = vld [vmem:[%s529 + $0x8] sm:$0xff]
          %v598 = vld [vmem:[%s2] sm:$0xff]
          %v599 = vld [vmem:[%s2 + $0x8] sm:$0xff]
          %v600 = vpack.c.bf16 %v599, %v598
          %v601 = vmul.f32 %v594, %v596
          %v602 = vmul.f32 %v595, %v597
          %v603 = vpack.c.bf16 %v602, %v601
          %v604 = vld [vmem:[%s3] sm:$0xff]
          %v605 = vld [vmem:[%s3 + $0x8] sm:$0xff]
          %607 = vset.pattern.permute.xlu0 0
          %608 = vperm.xlu0 %607, %v604
          %v609 = vpop.permute.xlu0 %608
          %612 = vset.pattern.permute.xlu0 0
          %613 = vperm.xlu0 %612, %v605
          %v614 = vpop.permute.xlu0 %613
          %vm616 = vcmask 130048
          %v618 = vsel %vm616, %v600, 0
          %620 = vmatprep.subr.bf16.mxu0 0
          %621 = vmatpush1.bf16.msra.mxu0 0
          %622 = vmatprep.subr.bf16.mxu0 0
          %623 = vmatpush1.bf16.msra.mxu0 0
          %624 = vmatprep.subr.bf16.mxu0 0
          %625 = vmatpush1.bf16.msra.mxu0 0
          %626 = vmatprep.subr.bf16.mxu0 0
          %627 = vmatpush1.bf16.msra.mxu0 0
          %628 = vmatprep.subr.bf16.mxu0 0
          %629 = vmatpush1.bf16.msra.mxu0 0
          %630 = vmatprep.subr.bf16.mxu0 0
          %631 = vmatpush1.bf16.msra.mxu0 0
          %632 = vmatprep.subr.bf16.mxu0 0
          %633 = vmatpush1.bf16.msra.mxu0 0
          %634 = vmatprep.subr.bf16.mxu0 0
          %635 = vmatpush1.bf16.msra.mxu0 %v603
          %636 = vmatprep.subr.bf16.mxu0 0
          %637 = vmatpush2.bf16.msra.mxu0 0
          %638 = vmatprep.subr.bf16.mxu0 0
          %639 = vmatpush2.bf16.msra.mxu0 0
          %640 = vmatprep.subr.bf16.mxu0 0
          %641 = vmatpush2.bf16.msra.mxu0 0
          %642 = vmatprep.subr.bf16.mxu0 0
          %643 = vmatpush2.bf16.msra.mxu0 0
          %644 = vmatprep.subr.bf16.mxu0 0
          %645 = vmatpush2.bf16.msra.mxu0 0
          %646 = vmatprep.subr.bf16.mxu0 0
          %647 = vmatpush2.bf16.msra.mxu0 0
          %648 = vmatprep.subr.bf16.mxu0 0
          %649 = vmatpush2.bf16.msra.mxu0 0
          %650 = vmatprep.subr.bf16.mxu0 0
          %651 = vmatpush2.bf16.msra.mxu0 0
          %652 = vmatprep.mubr.bf16.mxu0 0
          %653 = vmatmul.mubr.bf16.gmra.mxu0 %v618
          %v654 = vpop.f32.mrf.mxu0
          %v655 = vadd.f32 %v609, %v654
          %v656 = vpop.f32.mrf.mxu0
          %v657 = vpop.f32.mrf.mxu0
          %v658 = vadd.f32 %v614, %v657
          %v659 = vpop.f32.mrf.mxu0
          %660 = vdwg.mxu0
          %v661 = vld [vmem:[%s4] sm:$0xff]
          %v662 = vld [vmem:[%s4 + $0x8] sm:$0xff]
          %v663 = vpack.c.bf16 %v662, %v661
          %v664 = vpack.c.bf16 %v595, %v594
          %v665 = vld [vmem:[%s5] sm:$0xff]
          %v666 = vld [vmem:[%s5 + $0x8] sm:$0xff]
          %668 = vset.pattern.permute.xlu0 0
          %669 = vperm.xlu0 %668, %v665
          %v670 = vpop.permute.xlu0 %669
          %673 = vset.pattern.permute.xlu0 0
          %674 = vperm.xlu0 %673, %v666
          %v675 = vpop.permute.xlu0 %674
          %v678 = vsel %vm616, %v663, 0
          %680 = vmatprep.subr.bf16.mxu0 0
          %681 = vmatpush1.bf16.msra.mxu0 0
          %682 = vmatprep.subr.bf16.mxu0 0
          %683 = vmatpush1.bf16.msra.mxu0 0
          %684 = vmatprep.subr.bf16.mxu0 0
          %685 = vmatpush1.bf16.msra.mxu0 0
          %686 = vmatprep.subr.bf16.mxu0 0
          %687 = vmatpush1.bf16.msra.mxu0 0
          %688 = vmatprep.subr.bf16.mxu0 0
          %689 = vmatpush1.bf16.msra.mxu0 0
          %690 = vmatprep.subr.bf16.mxu0 0
          %691 = vmatpush1.bf16.msra.mxu0 0
          %692 = vmatprep.subr.bf16.mxu0 0
          %693 = vmatpush1.bf16.msra.mxu0 0
          %694 = vmatprep.subr.bf16.mxu0 0
          %695 = vmatpush1.bf16.msra.mxu0 %v664
          %696 = vmatprep.subr.bf16.mxu0 0
          %697 = vmatpush2.bf16.msra.mxu0 0
          %698 = vmatprep.subr.bf16.mxu0 0
          %699 = vmatpush2.bf16.msra.mxu0 0
          %700 = vmatprep.subr.bf16.mxu0 0
          %701 = vmatpush2.bf16.msra.mxu0 0
          %702 = vmatprep.subr.bf16.mxu0 0
          %703 = vmatpush2.bf16.msra.mxu0 0
          %704 = vmatprep.subr.bf16.mxu0 0
          %705 = vmatpush2.bf16.msra.mxu0 0
          %706 = vmatprep.subr.bf16.mxu0 0
          %707 = vmatpush2.bf16.msra.mxu0 0
          %708 = vmatprep.subr.bf16.mxu0 0
          %709 = vmatpush2.bf16.msra.mxu0 0
          %710 = vmatprep.subr.bf16.mxu0 0
          %711 = vmatpush2.bf16.msra.mxu0 0
          %712 = vmatprep.mubr.bf16.mxu0 0
          %713 = vmatmul.mubr.bf16.gmra.mxu0 %v678
          %v714 = vpop.f32.mrf.mxu0
          %v715 = vadd.f32 %v670, %v714
          %v716 = vpop.f32.mrf.mxu0
          %v717 = vpop.f32.mrf.mxu0
          %v718 = vadd.f32 %v675, %v717
          %v719 = vpop.f32.mrf.mxu0
          %720 = vdwg.mxu0
          %v721 = vld [vmem:[#allocation2] sm:$0xff]
          %v722 = vld [vmem:[#allocation2 + $0x8] sm:$0xff]
          %v723 = vmul.f32 %v655, %v655
          %v724 = vmul.f32 %v658, %v658
          %725 = vadd.xlane.f32.xlu0 %v723
          %v726 = vpop.xlane.xlu0 %725
          %727 = vadd.xlane.f32.xlu0 %v724
          %v728 = vpop.xlane.xlu0 %727
          %v729 = vadd.f32 %v721, %v726
          %v730 = vadd.f32 %v722, %v728
          %vm731 = vcmask 7168
          %732 = vst.msk [vmem:[#allocation2] sm:$0xff] %vm731, %v729
          %733 = vst.msk [vmem:[#allocation2 + $0x8] sm:$0xff] %vm731, %v730
          %v734 = vld [vmem:[#allocation3] sm:$0xff]
          %v735 = vld [vmem:[#allocation3 + $0x8] sm:$0xff]
          %v736 = vmul.f32 %v715, %v715
          %v737 = vmul.f32 %v718, %v718
          %738 = vadd.xlane.f32.xlu0 %v736
          %v739 = vpop.xlane.xlu0 %738
          %740 = vadd.xlane.f32.xlu0 %v737
          %v741 = vpop.xlane.xlu0 %740
          %v742 = vadd.f32 %v734, %v739
          %v743 = vadd.f32 %v735, %v741
          %744 = vst.msk [vmem:[#allocation3] sm:$0xff] %vm731, %v742
          %745 = vst.msk [vmem:[#allocation3 + $0x8] sm:$0xff] %vm731, %v743
          %v746 = vld [vmem:[#allocation4] sm:$0xff]
          %v747 = vld [vmem:[#allocation4 + $0x8] sm:$0xff]
          %v748 = vpack.c.bf16 %v658, %v655
          %v749 = vpack.c.bf16 %v718, %v715
          %750 = vmatprep.subr.bf16.mxu0 0
          %751 = vmatpush1.bf16.xpose.msra.mxu0 0
          %752 = vmatprep.subr.bf16.mxu0 0
          %753 = vmatpush1.bf16.xpose.msra.mxu0 0
          %754 = vmatprep.subr.bf16.mxu0 0
          %755 = vmatpush1.bf16.xpose.msra.mxu0 0
          %756 = vmatprep.subr.bf16.mxu0 0
          %757 = vmatpush1.bf16.xpose.msra.mxu0 0
          %758 = vmatprep.subr.bf16.mxu0 0
          %759 = vmatpush1.bf16.xpose.msra.mxu0 0
          %760 = vmatprep.subr.bf16.mxu0 0
          %761 = vmatpush1.bf16.xpose.msra.mxu0 0
          %762 = vmatprep.subr.bf16.mxu0 0
          %763 = vmatpush1.bf16.xpose.msra.mxu0 0
          %764 = vmatprep.subr.bf16.mxu0 0
          %765 = vmatpush1.bf16.xpose.msra.mxu0 %v749
          %766 = vmatprep.subr.bf16.mxu0 0
          %767 = vmatpush2.bf16.xpose.msra.mxu0 0
          %768 = vmatprep.subr.bf16.mxu0 0
          %769 = vmatpush2.bf16.xpose.msra.mxu0 0
          %770 = vmatprep.subr.bf16.mxu0 0
          %771 = vmatpush2.bf16.xpose.msra.mxu0 0
          %772 = vmatprep.subr.bf16.mxu0 0
          %773 = vmatpush2.bf16.xpose.msra.mxu0 0
          %774 = vmatprep.subr.bf16.mxu0 0
          %775 = vmatpush2.bf16.xpose.msra.mxu0 0
          %776 = vmatprep.subr.bf16.mxu0 0
          %777 = vmatpush2.bf16.xpose.msra.mxu0 0
          %778 = vmatprep.subr.bf16.mxu0 0
          %779 = vmatpush2.bf16.xpose.msra.mxu0 0
          %780 = vmatprep.subr.bf16.mxu0 0
          %781 = vmatpush2.bf16.xpose.msra.mxu0 0
          %782 = vmatprep.mubr.bf16.mxu0 0
          %783 = vmatmul.mubr.bf16.gmra.mxu0 %v748
          %v784 = vpop.f32.mrf.mxu0
          %v785 = vadd.f32 0.0, %v784
          %v786 = vpop.f32.mrf.mxu0
          %v787 = vpop.f32.mrf.mxu0
          %v788 = vadd.f32 0.0, %v787
          %v789 = vpop.f32.mrf.mxu0
          %790 = vdwg.mxu0
          %v791 = vadd.f32 %v746, %v785
          %v792 = vadd.f32 %v747, %v788
          %793 = vst.msk [vmem:[#allocation4] sm:$0xff] %vm616, %v791
          %794 = vst.msk [vmem:[#allocation4 + $0x8] sm:$0xff] %vm616, %v792
          %p795 = scmp.eq.s32.totalorder %s31, 1
          // Predicated region
          $region157: #{mutual_attention.1} parent=151 // pred_check
            %p796 = pneg %p795
          $region158: #{mutual_attention.1} parent=151 // pred_check_branch
            %798 = sbr.rel (%p796) target = $region160
          $region159: #{mutual_attention.1} parent=151 // pred_region
            %v799 = vld [vmem:[#allocation2] sm:$0xff]
            %v800 = vld [vmem:[#allocation2 + $0x8] sm:$0xff]
            %v801 = vmax.f32 %v799, 1e-24
            %v802 = vmax.f32 %v800, 1e-24
            %v803 = vrsqrt.pop %v801
            %v804 = vrsqrt.pop %v802
            %v805 = vld [vmem:[#allocation3] sm:$0xff]
            %v806 = vld [vmem:[#allocation3 + $0x8] sm:$0xff]
            %v807 = vmax.f32 %v805, 1e-24
            %v808 = vmax.f32 %v806, 1e-24
            %v809 = vrsqrt.pop %v807
            %v810 = vrsqrt.pop %v808
            %v811 = vld [vmem:[#allocation4] sm:$0xff]
            %v812 = vld [vmem:[#allocation4 + $0x8] sm:$0xff]
            %814 = vset.pattern.permute.xlu0 0
            %815 = vperm.xlu0 %814, %v803
            %v816 = vpop.permute.xlu0 %815
            %819 = vset.pattern.permute.xlu0 0
            %820 = vperm.xlu0 %819, %v804
            %v821 = vpop.permute.xlu0 %820
            %v823 = vmul.f32 %v811, %v816
            %v824 = vmul.f32 %v812, %v821
            %v825 = vld [vmem:[%s10] sm:$0xff]
            %v826 = vld [vmem:[%s10 + $0x8] sm:$0xff]
            %828 = vset.pattern.permute.xlu0 0
            %829 = vperm.xlu0 %828, %v825
            %v830 = vpop.permute.xlu0 %829
            %833 = vset.pattern.permute.xlu0 0
            %834 = vperm.xlu0 %833, %v826
            %v835 = vpop.permute.xlu0 %834
            %v837 = vmul.f32 %v823, %v830
            %v838 = vmul.f32 %v824, %v835
            %v839 = vld [vmem:[%s12] sm:$0xff]
            %v840 = vld [vmem:[%s12 + $0x8] sm:$0xff]
            %842 = vset.pattern.permute.xlu0 0
            %843 = vperm.xlu0 %842, %v809
            %v844 = vpop.permute.xlu0 %843
            %847 = vset.pattern.permute.xlu0 0
            %848 = vperm.xlu0 %847, %v810
            %v849 = vpop.permute.xlu0 %848
            %v851 = vmul.f32 %v839, %v844
            %v852 = vmul.f32 %v840, %v849
            %v854 = vsel %vm616, %v837, 0
            %v857 = vsel %vm616, %v838, 0
            %859 = vmatprep.subr.mxu0 0.0
            %860 = vmatpush1.msra.mxu0 0.0
            %861 = vmatprep.subr.mxu0 0.0
            %862 = vmatpush1.msra.mxu0 0.0
            %863 = vmatprep.subr.mxu0 0.0
            %864 = vmatpush1.msra.mxu0 0.0
            %865 = vmatprep.subr.mxu0 0.0
            %866 = vmatpush1.msra.mxu0 0.0
            %867 = vmatprep.subr.mxu0 0.0
            %868 = vmatpush1.msra.mxu0 0.0
            %869 = vmatprep.subr.mxu0 0.0
            %870 = vmatpush1.msra.mxu0 0.0
            %871 = vmatprep.subr.mxu0 0.0
            %872 = vmatpush1.msra.mxu0 0.0
            %873 = vmatprep.subr.mxu0 0.0
            %874 = vmatpush1.msra.mxu0 0.0
            %875 = vmatprep.subr.mxu0 0.0
            %876 = vmatpush1.msra.mxu0 0.0
            %877 = vmatprep.subr.mxu0 0.0
            %878 = vmatpush1.msra.mxu0 0.0
            %879 = vmatprep.subr.mxu0 0.0
            %880 = vmatpush1.msra.mxu0 0.0
            %881 = vmatprep.subr.mxu0 0.0
            %882 = vmatpush1.msra.mxu0 0.0
            %883 = vmatprep.subr.mxu0 0.0
            %884 = vmatpush1.msra.mxu0 0.0
            %885 = vmatprep.subr.mxu0 0.0
            %886 = vmatpush1.msra.mxu0 0.0
            %887 = vmatprep.subr.mxu0 0.0
            %888 = vmatpush1.msra.mxu0 %v852
            %889 = vmatprep.subr.mxu0 0.0
            %890 = vmatpush1.msra.mxu0 %v851
            %891 = vmatprep.subr.mxu0 0.0
            %892 = vmatpush2.msra.mxu0 0.0
            %893 = vmatprep.subr.mxu0 0.0
            %894 = vmatpush2.msra.mxu0 0.0
            %895 = vmatprep.subr.mxu0 0.0
            %896 = vmatpush2.msra.mxu0 0.0
            %897 = vmatprep.subr.mxu0 0.0
            %898 = vmatpush2.msra.mxu0 0.0
            %899 = vmatprep.subr.mxu0 0.0
            %900 = vmatpush2.msra.mxu0 0.0
            %901 = vmatprep.subr.mxu0 0.0
            %902 = vmatpush2.msra.mxu0 0.0
            %903 = vmatprep.subr.mxu0 0.0
            %904 = vmatpush2.msra.mxu0 0.0
            %905 = vmatprep.subr.mxu0 0.0
            %906 = vmatpush2.msra.mxu0 0.0
            %907 = vmatprep.subr.mxu0 0.0
            %908 = vmatpush2.msra.mxu0 0.0
            %909 = vmatprep.subr.mxu0 0.0
            %910 = vmatpush2.msra.mxu0 0.0
            %911 = vmatprep.subr.mxu0 0.0
            %912 = vmatpush2.msra.mxu0 0.0
            %913 = vmatprep.subr.mxu0 0.0
            %914 = vmatpush2.msra.mxu0 0.0
            %915 = vmatprep.subr.mxu0 0.0
            %916 = vmatpush2.msra.mxu0 0.0
            %917 = vmatprep.subr.mxu0 0.0
            %918 = vmatpush2.msra.mxu0 0.0
            %919 = vmatprep.subr.mxu0 0.0
            %920 = vmatpush2.msra.mxu0 0.0
            %921 = vmatprep.subr.mxu0 0.0
            %922 = vmatpush2.msra.mxu0 0.0
            %923 = vmatprep.mubr.f32.mxu0 0.0
            %924 = vmatmul.mubr.f32.gmra.mxu0 %v854
            %v925 = vpop.f32.mrf.mxu0
            %v926 = vadd.f32 0.0, %v925
            %v927 = vpop.f32.mrf.mxu0
            %928 = vmatprep.mubr.f32.mxu0 0.0
            %929 = vmatmul.mubr.f32.gmra.mxu0 %v857
            %v930 = vpop.f32.mrf.mxu0
            %v931 = vadd.f32 0.0, %v930
            %v932 = vpop.f32.mrf.mxu0
            %933 = vdwg.mxu0
            %v934 = vmul.f32 %v926, 1.442695
            %v935 = vpow.pop %v934
            %v936 = vmul.f32 %v931, 1.442695
            %v937 = vpow.pop %v936
            %v938 = vld [vmem:[%s11] sm:$0xff]
            %v939 = vld [vmem:[%s11 + $0x8] sm:$0xff]
            %v940 = vmul.f32 %v935, %v938
            %v941 = vmul.f32 %v937, %v939
            %v942 = vsel %vm616, %v940, 0.0
            %943 = vadd.xlane.f32.xlu0 %v942
            %v944 = vpop.xlane.xlu0 %943
            %v945 = vsel %vm616, %v941, 0.0
            %946 = vadd.xlane.f32.xlu0 %v945
            %v947 = vpop.xlane.xlu0 %946
            %v948 = vrcp.pop %v944
            %v949 = vrcp.pop %v947
            %v950 = vmul.f32 %v940, %v948
            %v951 = vmul.f32 %v941, %v949
            %v952 = vld [vmem:[%s8] sm:$0xff]
            %v953 = vld [vmem:[%s8 + $0x8] sm:$0xff]
            %v955 = vsel %vm616, %v952, 0
            %v958 = vsel %vm616, %v953, 0
            %960 = vmatprep.subr.mxu0 0.0
            %961 = vmatpush1.msra.mxu0 0.0
            %962 = vmatprep.subr.mxu0 0.0
            %963 = vmatpush1.msra.mxu0 0.0
            %964 = vmatprep.subr.mxu0 0.0
            %965 = vmatpush1.msra.mxu0 0.0
            %966 = vmatprep.subr.mxu0 0.0
            %967 = vmatpush1.msra.mxu0 0.0
            %968 = vmatprep.subr.mxu0 0.0
            %969 = vmatpush1.msra.mxu0 0.0
            %970 = vmatprep.subr.mxu0 0.0
            %971 = vmatpush1.msra.mxu0 0.0
            %972 = vmatprep.subr.mxu0 0.0
            %973 = vmatpush1.msra.mxu0 0.0
            %974 = vmatprep.subr.mxu0 0.0
            %975 = vmatpush1.msra.mxu0 0.0
            %976 = vmatprep.subr.mxu0 0.0
            %977 = vmatpush1.msra.mxu0 0.0
            %978 = vmatprep.subr.mxu0 0.0
            %979 = vmatpush1.msra.mxu0 0.0
            %980 = vmatprep.subr.mxu0 0.0
            %981 = vmatpush1.msra.mxu0 0.0
            %982 = vmatprep.subr.mxu0 0.0
            %983 = vmatpush1.msra.mxu0 0.0
            %984 = vmatprep.subr.mxu0 0.0
            %985 = vmatpush1.msra.mxu0 0.0
            %986 = vmatprep.subr.mxu0 0.0
            %987 = vmatpush1.msra.mxu0 0.0
            %988 = vmatprep.subr.mxu0 0.0
            %989 = vmatpush1.msra.mxu0 %v951
            %990 = vmatprep.subr.mxu0 0.0
            %991 = vmatpush1.msra.mxu0 %v950
            %992 = vmatprep.subr.mxu0 0.0
            %993 = vmatpush2.msra.mxu0 0.0
            %994 = vmatprep.subr.mxu0 0.0
            %995 = vmatpush2.msra.mxu0 0.0
            %996 = vmatprep.subr.mxu0 0.0
            %997 = vmatpush2.msra.mxu0 0.0
            %998 = vmatprep.subr.mxu0 0.0
            %999 = vmatpush2.msra.mxu0 0.0
            %1000 = vmatprep.subr.mxu0 0.0
            %1001 = vmatpush2.msra.mxu0 0.0
            %1002 = vmatprep.subr.mxu0 0.0
            %1003 = vmatpush2.msra.mxu0 0.0
            %1004 = vmatprep.subr.mxu0 0.0
            %1005 = vmatpush2.msra.mxu0 0.0
            %1006 = vmatprep.subr.mxu0 0.0
            %1007 = vmatpush2.msra.mxu0 0.0
            %1008 = vmatprep.subr.mxu0 0.0
            %1009 = vmatpush2.msra.mxu0 0.0
            %1010 = vmatprep.subr.mxu0 0.0
            %1011 = vmatpush2.msra.mxu0 0.0
            %1012 = vmatprep.subr.mxu0 0.0
            %1013 = vmatpush2.msra.mxu0 0.0
            %1014 = vmatprep.subr.mxu0 0.0
            %1015 = vmatpush2.msra.mxu0 0.0
            %1016 = vmatprep.subr.mxu0 0.0
            %1017 = vmatpush2.msra.mxu0 0.0
            %1018 = vmatprep.subr.mxu0 0.0
            %1019 = vmatpush2.msra.mxu0 0.0
            %1020 = vmatprep.subr.mxu0 0.0
            %1021 = vmatpush2.msra.mxu0 0.0
            %1022 = vmatprep.subr.mxu0 0.0
            %1023 = vmatpush2.msra.mxu0 0.0
            %1024 = vmatprep.mubr.f32.mxu0 0.0
            %1025 = vmatmul.mubr.f32.gmra.mxu0 %v955
            %v1026 = vpop.f32.mrf.mxu0
            %v1027 = vadd.f32 0.0, %v1026
            %v1028 = vpop.f32.mrf.mxu0
            %1029 = vmatprep.mubr.f32.mxu0 0.0
            %1030 = vmatmul.mubr.f32.gmra.mxu0 %v958
            %v1031 = vpop.f32.mrf.mxu0
            %v1032 = vadd.f32 0.0, %v1031
            %v1033 = vpop.f32.mrf.mxu0
            %1034 = vdwg.mxu0
            %v1035 = vld [vmem:[%s6] sm:$0xff]
            %v1036 = vld [vmem:[%s6 + $0x8] sm:$0xff]
            %v1038 = vsel %vm616, %v1027, 0
            %v1041 = vsel %vm616, %v1032, 0
            %1043 = vmatprep.subr.mxu0 0.0
            %1044 = vmatpush1.msra.mxu0 0.0
            %1045 = vmatprep.subr.mxu0 0.0
            %1046 = vmatpush1.msra.mxu0 0.0
            %1047 = vmatprep.subr.mxu0 0.0
            %1048 = vmatpush1.msra.mxu0 0.0
            %1049 = vmatprep.subr.mxu0 0.0
            %1050 = vmatpush1.msra.mxu0 0.0
            %1051 = vmatprep.subr.mxu0 0.0
            %1052 = vmatpush1.msra.mxu0 0.0
            %1053 = vmatprep.subr.mxu0 0.0
            %1054 = vmatpush1.msra.mxu0 0.0
            %1055 = vmatprep.subr.mxu0 0.0
            %1056 = vmatpush1.msra.mxu0 0.0
            %1057 = vmatprep.subr.mxu0 0.0
            %1058 = vmatpush1.msra.mxu0 0.0
            %1059 = vmatprep.subr.mxu0 0.0
            %1060 = vmatpush1.msra.mxu0 0.0
            %1061 = vmatprep.subr.mxu0 0.0
            %1062 = vmatpush1.msra.mxu0 0.0
            %1063 = vmatprep.subr.mxu0 0.0
            %1064 = vmatpush1.msra.mxu0 0.0
            %1065 = vmatprep.subr.mxu0 0.0
            %1066 = vmatpush1.msra.mxu0 0.0
            %1067 = vmatprep.subr.mxu0 0.0
            %1068 = vmatpush1.msra.mxu0 0.0
            %1069 = vmatprep.subr.mxu0 0.0
            %1070 = vmatpush1.msra.mxu0 0.0
            %1071 = vmatprep.subr.mxu0 0.0
            %1072 = vmatpush1.msra.mxu0 %v1036
            %1073 = vmatprep.subr.mxu0 0.0
            %1074 = vmatpush1.msra.mxu0 %v1035
            %1075 = vmatprep.subr.mxu0 0.0
            %1076 = vmatpush2.msra.mxu0 0.0
            %1077 = vmatprep.subr.mxu0 0.0
            %1078 = vmatpush2.msra.mxu0 0.0
            %1079 = vmatprep.subr.mxu0 0.0
            %1080 = vmatpush2.msra.mxu0 0.0
            %1081 = vmatprep.subr.mxu0 0.0
            %1082 = vmatpush2.msra.mxu0 0.0
            %1083 = vmatprep.subr.mxu0 0.0
            %1084 = vmatpush2.msra.mxu0 0.0
            %1085 = vmatprep.subr.mxu0 0.0
            %1086 = vmatpush2.msra.mxu0 0.0
            %1087 = vmatprep.subr.mxu0 0.0
            %1088 = vmatpush2.msra.mxu0 0.0
            %1089 = vmatprep.subr.mxu0 0.0
            %1090 = vmatpush2.msra.mxu0 0.0
            %1091 = vmatprep.subr.mxu0 0.0
            %1092 = vmatpush2.msra.mxu0 0.0
            %1093 = vmatprep.subr.mxu0 0.0
            %1094 = vmatpush2.msra.mxu0 0.0
            %1095 = vmatprep.subr.mxu0 0.0
            %1096 = vmatpush2.msra.mxu0 0.0
            %1097 = vmatprep.subr.mxu0 0.0
            %1098 = vmatpush2.msra.mxu0 0.0
            %1099 = vmatprep.subr.mxu0 0.0
            %1100 = vmatpush2.msra.mxu0 0.0
            %1101 = vmatprep.subr.mxu0 0.0
            %1102 = vmatpush2.msra.mxu0 0.0
            %1103 = vmatprep.subr.mxu0 0.0
            %1104 = vmatpush2.msra.mxu0 0.0
            %1105 = vmatprep.subr.mxu0 0.0
            %1106 = vmatpush2.msra.mxu0 0.0
            %1107 = vmatprep.mubr.f32.mxu0 0.0
            %1108 = vmatmul.mubr.f32.gmra.mxu0 %v1038
            %v1109 = vpop.f32.mrf.mxu0
            %v1110 = vadd.f32 0.0, %v1109
            %v1111 = vpop.f32.mrf.mxu0
            %1112 = vmatprep.mubr.f32.mxu0 0.0
            %1113 = vmatmul.mubr.f32.gmra.mxu0 %v1041
            %v1114 = vpop.f32.mrf.mxu0
            %v1115 = vadd.f32 0.0, %v1114
            %v1116 = vpop.f32.mrf.mxu0
            %1117 = vdwg.mxu0
            %1118 = vst.msk [vmem:[#allocation5] sm:$0xff] %vm616, %v1110
            %1119 = vst.msk [vmem:[#allocation5 + $0x8] sm:$0xff] %vm616, %v1115
            %v1120 = vld [vmem:[%s7] sm:$0x1]
            %v1122 = vlaneseq
            %v1123 = vshrl.u32 %v1122, 7
            %v1124 = vsub.s32 0, %v1123
            %v1125 = vrot.slane %v1120, %v1124
            %v1127 = vmul.f32 %v1027, %v1125
            %v1128 = vmul.f32 %v1032, %v1125
            %v1129 = vsel %vm616, %v1127, 0.0
            %1130 = vadd.xlane.f32.xlu0 %v1129
            %v1131 = vpop.xlane.xlu0 %1130
            %v1132 = vsel %vm616, %v1128, 0.0
            %1133 = vadd.xlane.f32.xlu0 %v1132
            %v1134 = vpop.xlane.xlu0 %1133
            %v1135 = vld [vmem:[%s9] sm:$0xff]
            %v1136 = vld [vmem:[%s9 + $0x8] sm:$0xff]
            %v1137 = vadd.f32 %v1131, %v1135
            %v1138 = vadd.f32 %v1134, %v1136
            %1139 = vst.msk [vmem:[#allocation6] sm:$0xff] %vm731, %v1137
            %1140 = vst.msk [vmem:[#allocation6 + $0x8] sm:$0xff] %vm731, %v1138
          $region160: #{mutual_attention.1} parent=151 // pred_fallthru
            _
        $region152: #{mutual_attention.1} parent=139 // pred_fallthru
          _
        %p1141 = scmp.eq.s32.totalorder %s30, 1
        // Predicated region
        $region161: #{mutual_attention.1} parent=139 // pred_check
          %p1142 = pneg %p1141
        $region162: #{mutual_attention.1} parent=139 // pred_check_branch
          %1144 = sbr.rel (%p1142) target = $region164
        $region163: #{mutual_attention.1} parent=139 // pred_region
          %v1145 = vld [vmem:[%s522] sm:$0xff]
          %v1146 = vld [vmem:[%s522 + $0x8] sm:$0xff]
          %v1147 = vld [vmem:[#allocation5] sm:$0xff]
          %v1148 = vld [vmem:[#allocation5 + $0x8] sm:$0xff]
          %v1149 = vpack.c.bf16 %v1148, %v1147
          %v1150 = vpack.c.bf16 %v1146, %v1145
          %v1151 = vld [vmem:[#allocation6] sm:$0xff]
          %v1152 = vld [vmem:[#allocation6 + $0x8] sm:$0xff]
          %1154 = vset.pattern.permute.xlu0 0
          %1155 = vperm.xlu0 %1154, %v1151
          %v1156 = vpop.permute.xlu0 %1155
          %1159 = vset.pattern.permute.xlu0 0
          %1160 = vperm.xlu0 %1159, %v1152
          %v1161 = vpop.permute.xlu0 %1160
          %vm1163 = vcmask 130048
          %v1165 = vsel %vm1163, %v1149, 0
          %1167 = vmatprep.subr.bf16.mxu0 0
          %1168 = vmatpush1.bf16.msra.mxu0 0
          %1169 = vmatprep.subr.bf16.mxu0 0
          %1170 = vmatpush1.bf16.msra.mxu0 0
          %1171 = vmatprep.subr.bf16.mxu0 0
          %1172 = vmatpush1.bf16.msra.mxu0 0
          %1173 = vmatprep.subr.bf16.mxu0 0
          %1174 = vmatpush1.bf16.msra.mxu0 0
          %1175 = vmatprep.subr.bf16.mxu0 0
          %1176 = vmatpush1.bf16.msra.mxu0 0
          %1177 = vmatprep.subr.bf16.mxu0 0
          %1178 = vmatpush1.bf16.msra.mxu0 0
          %1179 = vmatprep.subr.bf16.mxu0 0
          %1180 = vmatpush1.bf16.msra.mxu0 0
          %1181 = vmatprep.subr.bf16.mxu0 0
          %1182 = vmatpush1.bf16.msra.mxu0 %v1150
          %1183 = vmatprep.subr.bf16.mxu0 0
          %1184 = vmatpush2.bf16.msra.mxu0 0
          %1185 = vmatprep.subr.bf16.mxu0 0
          %1186 = vmatpush2.bf16.msra.mxu0 0
          %1187 = vmatprep.subr.bf16.mxu0 0
          %1188 = vmatpush2.bf16.msra.mxu0 0
          %1189 = vmatprep.subr.bf16.mxu0 0
          %1190 = vmatpush2.bf16.msra.mxu0 0
          %1191 = vmatprep.subr.bf16.mxu0 0
          %1192 = vmatpush2.bf16.msra.mxu0 0
          %1193 = vmatprep.subr.bf16.mxu0 0
          %1194 = vmatpush2.bf16.msra.mxu0 0
          %1195 = vmatprep.subr.bf16.mxu0 0
          %1196 = vmatpush2.bf16.msra.mxu0 0
          %1197 = vmatprep.subr.bf16.mxu0 0
          %1198 = vmatpush2.bf16.msra.mxu0 0
          %1199 = vmatprep.mubr.bf16.mxu0 0
          %1200 = vmatmul.mubr.bf16.gmra.mxu0 %v1165
          %v1201 = vpop.f32.mrf.mxu0
          %v1202 = vadd.f32 %v1156, %v1201
          %v1203 = vpop.f32.mrf.mxu0
          %v1204 = vpop.f32.mrf.mxu0
          %v1205 = vadd.f32 %v1161, %v1204
          %v1206 = vpop.f32.mrf.mxu0
          %1207 = vdwg.mxu0
          %1208 = vst [vmem:[%s572] sm:$0xff] %v1202
          %1209 = vst [vmem:[%s572 + $0x8] sm:$0xff] %v1205
        $region164: #{mutual_attention.1} parent=139 // pred_fallthru
          _
        %s1210 = sand.u32 %s348, 1
        %s1211 = sand.u32 %s348, 1
        %s1212 = smul.addr %s1211, 16
        %s1213 = scalar_lea.vmem [#allocation9], %s1212
        // Predicated region
        $region165: #{mutual_attention.1} parent=139 // pred_check
          %p1214 = pneg %p358
        $region166: #{mutual_attention.1} parent=139 // pred_check_branch
          %1216 = sbr.rel (%p1214) target = $region168
        $region167: #{mutual_attention.1} parent=139 // pred_region
          %s1217 = smul.u32 %s30, %s31
          %s1218 = smul.addr %s29, 4
          %s1219 = sadd.s32 %s1217, %s1218
          %s1220 = smul.addr %s1219, 8
          %s1221 = scalar_lea.vmem %s13, %s1220
          // Predicated region
          $region169: #{mutual_attention.1} parent=167 // pred_check
            _
          $region170: #{mutual_attention.1} parent=167 // pred_check_branch
            %1223 = sbr.rel (0) target = $region172
          $region171: #{mutual_attention.1} parent=167 // pred_region
            // Predicated region
            $region173: #{mutual_attention.1} parent=171 // pred_check
              _
            $region174: #{mutual_attention.1} parent=171 // pred_check_branch
              %1225 = sbr.rel (0) target = $region176
            $region175: #{mutual_attention.1} parent=171 // pred_region
              // Predicated region
              $region188: #{mutual_attention.1} parent=175 // pred_check
                _
              $region189: #{mutual_attention.1} parent=175 // pred_check_branch
                %1243 = sbr.rel (0) target = $region191
              $region190: #{mutual_attention.1} parent=175 // pred_region
                loop: start=0, step=1, limit=1
                $region192: #{mutual_attention.1} parent=190 // loop_pre_header
                  _
                $region193: #{mutual_attention.1} parent=190 // loop_header
                  %s1245 = sphi 0, %s1249
                  %p1246 = scmp.ge.s32.totalorder %s1245, 1
                  %s1250 = sphi %s1213, %s1213
                  %s1251 = sphi %s1221, %s1221
                $region194: #{mutual_attention.1} parent=190 // loop_header_branch
                  %1248 = sbr.rel (%p1246) target = $region198
                $region195: #{mutual_attention.1} parent=190 // loop_body
                  %v1252 = vld [vmem:[%s1250] sm:$0xff]
                  %1253 = vst [vmem:[%s1251] sm:$0xff] %v1252
                  %v1254 = vld [vmem:[%s1250 + $0x8] sm:$0xff]
                  %1255 = vst [vmem:[%s1251 + $0x10] sm:$0xff] %v1254
                $region196: #{mutual_attention.1} parent=190 // loop_footer
                  %s1249 = sadd.s32 1, %s1245
                $region197: #{mutual_attention.1} parent=190 // loop_footer_branch
                  %1244 = sbr.rel target = $region193
                $region198: #{mutual_attention.1} parent=190 // loop_exit
                  _
              $region191: #{mutual_attention.1} parent=175 // pred_fallthru
                _
              // Predicated region
              $region199: #{mutual_attention.1} parent=175 // pred_check
                _
              $region200: #{mutual_attention.1} parent=175 // pred_check_branch
                %1257 = sbr.rel target = $region202
              $region201: #{mutual_attention.1} parent=175 // pred_region
                _
              $region202: #{mutual_attention.1} parent=175 // pred_fallthru
                _
            $region176: #{mutual_attention.1} parent=171 // pred_fallthru
              _
            // Predicated region
            $region177: #{mutual_attention.1} parent=171 // pred_check
              _
            $region178: #{mutual_attention.1} parent=171 // pred_check_branch
              %1227 = sbr.rel target = $region180
            $region179: #{mutual_attention.1} parent=171 // pred_region
              %s1229 = ssub.s32 256, 1
              loop: start=0, step=1, limit=1
              $region181: #{mutual_attention.1} parent=179 // loop_pre_header
                _
              $region182: #{mutual_attention.1} parent=179 // loop_header
                %s1231 = sphi 0, %s1235
                %p1232 = scmp.ge.s32.totalorder %s1231, 1
                %s1236 = sphi %s1213, %s1213
                %s1237 = sphi %s1221, %s1221
              $region183: #{mutual_attention.1} parent=179 // loop_header_branch
                %1234 = sbr.rel (%p1232) target = $region187
              $region184: #{mutual_attention.1} parent=179 // loop_body
                %v1238 = vld [vmem:[%s1236] sm:%s1229]
                %1239 = vst [vmem:[%s1237] sm:%s1229] %v1238
                %v1240 = vld [vmem:[%s1236 + $0x8] sm:%s1229]
                %1241 = vst [vmem:[%s1237 + $0x10] sm:%s1229] %v1240
              $region185: #{mutual_attention.1} parent=179 // loop_footer
                %s1235 = sadd.s32 1, %s1231
              $region186: #{mutual_attention.1} parent=179 // loop_footer_branch
                %1230 = sbr.rel target = $region182
              $region187: #{mutual_attention.1} parent=179 // loop_exit
                _
            $region180: #{mutual_attention.1} parent=171 // pred_fallthru
              _
          $region172: #{mutual_attention.1} parent=167 // pred_fallthru
            _
          %1258 = vnop
        $region168: #{mutual_attention.1} parent=139 // pred_fallthru
          _
      $region140: #{mutual_attention.1} parent=5 // pred_fallthru
        _
      %p1259 = scmp.le.s32.totalorder 2, %s19
      // Predicated region
      $region203: #{mutual_attention.1} parent=5 // pred_check
        %p1260 = pneg %p1259
      $region204: #{mutual_attention.1} parent=5 // pred_check_branch
        %1262 = sbr.rel (%p1260) target = $region206
      $region205: #{mutual_attention.1} parent=5 // pred_region
        %s1263 = ssub.s32 %s19, 2
        // Predicated region
        $region207: #{mutual_attention.1} parent=205 // pred_check
          %p1264 = pneg %p364
        $region208: #{mutual_attention.1} parent=205 // pred_check_branch
          %1266 = sbr.rel (%p1264) target = $region210
        $region209: #{mutual_attention.1} parent=205 // pred_region
          %s1267 = sand.u32 %s349, 1
          %s1268 = sand.u32 %s349, 1
          %s1269 = smul.addr %s1268, 16
          %s1270 = scalar_lea.vmem [#allocation9], %s1269
        $region210: #{mutual_attention.1} parent=205 // pred_fallthru
          _
      $region206: #{mutual_attention.1} parent=5 // pred_fallthru
        _
    $region6: #{mutual_attention.1} parent=1 // loop_footer
      %s23 = sadd.s32 1, %s19
    $region7: #{mutual_attention.1} parent=1 // loop_footer_branch
      %18 = sbr.rel target = $region3
    $region8: #{mutual_attention.1} parent=1 // loop_exit
      _

</llo_original>
